<compile_context>
chip_gen: v7x
topology: tpu7x:2x2x1
jax: 0.10.0
libtpu: 0.0.40
codegen_flags: <defaults>
</compile_context>

<pallas_src>
import functools

import jax
import jax.numpy as jnp
from jax.experimental import pallas as pl
from jax.experimental.pallas import tpu as pltpu


# ----------------------------------------------------------------------------
# In-kernel helpers (traced inline into the fused kernel).
# ----------------------------------------------------------------------------
def _conv3x3_im2col(x, wmat_ref, b_ref, tap_masks, *, W, HW, leaky):
    """3x3 'same' conv on a channels-first slab as a single MXU matmul.

    x:         (Cin_p, HW) f32 value, HW flattened row-major on the lane axis.
    wmat_ref:  (Cout_p, 9*Cin_p) ref; column t*Cin_p + i holds tap-t / cin-i.
    b_ref:     (Cout_p, 1) ref.
    tap_masks: list of 9 (1, HW) f32 border-validity masks (zero padding).
    Returns (Cout_p, HW) f32.
    """
    patches = []
    for t in range(9):
        oy, ox = t // 3 - 1, t % 3 - 1
        shift = oy * W + ox                       # flat offset of the source pixel
        if shift == 0:
            patches.append(x)
        else:
            patches.append(pltpu.roll(x, shift=(-shift) % HW, axis=1) * tap_masks[t])
    p = jnp.concatenate(patches, axis=0)          # (9*Cin_p, HW), sublane-stacked
    acc = jnp.dot(wmat_ref[...], p, preferred_element_type=jnp.float32)
    acc = acc + b_ref[...]
    if leaky:
        acc = jnp.where(acc >= 0.0, acc, 0.2 * acc)
    return acc


def _voxel_kernel(rc_ref, x_ref, srcwt_ref,
                  w1_ref, b1_ref, w2_ref, b2_ref, wf_ref, bf_ref,
                  y_ref, flow_ref, *, H, W, C, n_dim):
    HW = H * W
    row = rc_ref[0:1, :]                          # (1, HW) pixel row index (f32)
    col = rc_ref[1:2, :]                          # (1, HW) pixel col index (f32)

    # Border-validity masks for the 9 conv taps (shared by all three convs).
    tap_masks = []
    for t in range(9):
        oy, ox = t // 3 - 1, t % 3 - 1
        m = ((row + oy >= 0.0) & (row + oy <= H - 1.0) &
             (col + ox >= 0.0) & (col + ox <= W - 1.0)).astype(jnp.float32)
        tap_masks.append(m)

    x = x_ref[0].astype(jnp.float32)              # (c_init_p, HW) = cat(source, target)

    # UNet stand-in + flow head (one MXU matmul per conv).
    h = _conv3x3_im2col(x, w1_ref, b1_ref, tap_masks, W=W, HW=HW, leaky=True)
    h = _conv3x3_im2col(h, w2_ref, b2_ref, tap_masks, W=W, HW=HW, leaky=True)
    flow = _conv3x3_im2col(h, wf_ref, bf_ref, tap_masks, W=W, HW=HW, leaky=False)

    # --- SpatialTransformer: bilinear, align_corners=True, zeros padding ------
    # Separable formulation: A (H, HW) = per-output-pixel row weights,
    # B (W, HW) = per-output-pixel column weights; out = sum_w B * (src^T @ A).
    ys = row + flow[0:1, :]                       # sample row coordinate
    xs = col + flow[1:2, :]                       # sample col coordinate
    y0 = jnp.floor(ys)
    x0 = jnp.floor(xs)
    wy1 = ys - y0
    wx1 = xs - x0

    def interp_onehot(coord0, frac, n):
        iota = jax.lax.broadcasted_iota(jnp.int32, (n, 1), 0)
        out = None
        for cc, wgt in ((coord0, 1.0 - frac), (coord0 + 1.0, frac)):
            valid = ((cc >= 0.0) & (cc <= n - 1.0)).astype(jnp.float32)
            idx = jnp.clip(cc, 0.0, n - 1.0).astype(jnp.int32)         # (1, HW)
            term = (wgt * valid) * (iota == idx).astype(jnp.float32)   # (n, HW)
            out = term if out is None else out + term
        return out

    a_rows = interp_onehot(y0, wy1, H)            # (H, HW)
    b_cols = interp_onehot(x0, wx1, W)            # (W, HW)

    # One batched MXU matmul over all channels: (C*W, H) @ (H, HW) -> (C*W, HW)
    src_t = srcwt_ref[0].astype(jnp.float32)
    t_all = jnp.dot(src_t, a_rows, preferred_element_type=jnp.float32)
    outs = []
    for ch in range(C):
        outs.append(jnp.sum(b_cols * t_all[ch * W:(ch + 1) * W, :],
                            axis=0, keepdims=True))                    # (1, HW)
    y = outs[0] if C == 1 else jnp.concatenate(outs, axis=0)

    y_ref[0] = y.astype(y_ref.dtype)
    flow_ref[0] = flow.astype(flow_ref.dtype)     # padded rows stored; wrapper slices


# ----------------------------------------------------------------------------
# Wrapper glue (parameter prep + pallas_call).
# ----------------------------------------------------------------------------
def _round_up8(n):
    return ((n + 7) // 8) * 8


def _prep_w_im2col(w, cin_p, cout_p):
    """(3, 3, Cin, Cout) -> (Cout_p, 9*Cin_p) im2col weight matrix."""
    kh, kw, cin, cout = w.shape
    w9 = w.reshape(kh * kw, cin, cout)
    w9 = jnp.pad(w9, ((0, 0), (0, cin_p - cin), (0, cout_p - cout)))
    return jnp.transpose(w9, (2, 0, 1)).reshape(cout_p, kh * kw * cin_p)


def _prep_b(b, cout_p):
    return jnp.pad(b.reshape(-1, 1), ((0, cout_p - b.shape[0]), (0, 0)))


def init_params(key, c_init, c_out, n_dim):
    k1, k2, k3 = jax.random.split(key, 3)
    return {
        # UNet stand-in (see TODO above)
        "unet_w1": 0.05 * jax.random.normal(k1, (3, 3, c_init, c_out), jnp.float32),
        "unet_b1": jnp.zeros((c_out,), jnp.float32),
        "unet_w2": 0.05 * jax.random.normal(k2, (3, 3, c_out, c_out), jnp.float32),
        "unet_b2": jnp.zeros((c_out,), jnp.float32),
        # flow conv: weights ~ Normal(0, 1e-5), bias = 0 (as in the module)
        "flow_w": 1e-5 * jax.random.normal(k3, (3, 3, c_out, n_dim), jnp.float32),
        "flow_b": jnp.zeros((n_dim,), jnp.float32),
    }


@jax.jit
def voxel_model_forward(params, source, target):
    """source, target: NCHW float32.  Returns (y_source NCHW, flow_field NHWC)."""
    N, C, H, W = source.shape
    HW = H * W
    c_init = 2 * C
    c_out = params["unet_w1"].shape[-1]
    n_dim = params["flow_w"].shape[-1]
    c_init_p = _round_up8(c_init)
    c_out_p = _round_up8(c_out)
    n_dim_p = _round_up8(n_dim)

    # Channels-first with H*W flattened on the lane axis; pad channels to >= 8.
    x = jnp.concatenate([source, target], axis=1).reshape(N, c_init, HW)
    x = jnp.pad(x, ((0, 0), (0, c_init_p - c_init), (0, 0)))
    # Source transposed to per-channel (W, H) slabs for the separable warp.
    src_wt = jnp.transpose(source, (0, 1, 3, 2)).reshape(N, C * W, H)

    # Per-output-pixel (row, col) indices, shared across the batch.
    ii = jnp.arange(HW, dtype=jnp.float32)
    rc = jnp.stack([jnp.floor(ii / W), jnp.mod(ii, W)], axis=0)        # (2, HW)

    w1 = _prep_w_im2col(params["unet_w1"], c_init_p, c_out_p)
    b1 = _prep_b(params["unet_b1"], c_out_p)
    w2 = _prep_w_im2col(params["unet_w2"], c_out_p, c_out_p)
    b2 = _prep_b(params["unet_b2"], c_out_p)
    wf = _prep_w_im2col(params["flow_w"], c_out_p, n_dim_p)
    bf = _prep_b(params["flow_b"], n_dim_p)

    kern = functools.partial(_voxel_kernel, H=H, W=W, C=C, n_dim=n_dim)
    y_flat, flow_flat = pl.pallas_call(
        kern,
        out_shape=(jax.ShapeDtypeStruct((N, C, HW), jnp.float32),
                   jax.ShapeDtypeStruct((N, n_dim_p, HW), jnp.float32)),
        grid=(N,),
        in_specs=[
            pl.BlockSpec((2, HW), lambda n: (0, 0)),                    # rc
            pl.BlockSpec((1, c_init_p, HW), lambda n: (n, 0, 0)),       # cat(src,tgt)
            pl.BlockSpec((1, C * W, H), lambda n: (n, 0, 0)),           # src^T slabs
            pl.BlockSpec((c_out_p, 9 * c_init_p), lambda n: (0, 0)),    # w1 (im2col)
            pl.BlockSpec((c_out_p, 1), lambda n: (0, 0)),               # b1
            pl.BlockSpec((c_out_p, 9 * c_out_p), lambda n: (0, 0)),     # w2 (im2col)
            pl.BlockSpec((c_out_p, 1), lambda n: (0, 0)),               # b2
            pl.BlockSpec((n_dim_p, 9 * c_out_p), lambda n: (0, 0)),     # wf (im2col)
            pl.BlockSpec((n_dim_p, 1), lambda n: (0, 0)),               # bf
        ],
        out_specs=(
            pl.BlockSpec((1, C, HW), lambda n: (n, 0, 0)),              # y_source
            pl.BlockSpec((1, n_dim_p, HW), lambda n: (n, 0, 0)),        # flow (padded)
        ),
        compiler_params=pltpu.CompilerParams(
            dimension_semantics=("parallel",)),
    )(rc, x, src_wt, w1, b1, w2, b2, wf, bf)

    y_source = y_flat.reshape(N, C, H, W)                               # NCHW
    flow_field = jnp.transpose(
        flow_flat[:, :n_dim, :].reshape(N, n_dim, H, W), (0, 2, 3, 1))  # NHWC
    return y_source, flow_field


if __name__ == "__main__":
    key = jax.random.PRNGKey(0)
    k_src, k_tgt, k_par = jax.random.split(key, 3)

    # img_size = (16, 16); single-channel source/target -> c_init = 2, c_out = 16
    N, C, H, W = 2, 1, 16, 16
    c_init, c_out, n_dim = 2 * C, 16, 2

    source = jax.random.normal(k_src, (N, C, H, W), jnp.float32)
    target = jax.random.normal(k_tgt, (N, C, H, W), jnp.float32)
    params = init_params(k_par, c_init, c_out, n_dim)

    y_source, flow_field = voxel_model_forward(params, source, target)
    jax.block_until_ready((y_source, flow_field))

    assert y_source.shape == (N, C, H, W)
    assert flow_field.shape == (N, H, W, n_dim)
    print("KERNEL_OK")
</pallas_src>

<mosaic_0001>
module attributes {stable_mosaic.version = 11 : i64} {
  func.func @_voxel_kernel(%arg0: i32, %arg1: memref<2x256xf32, #tpu.memory_space<vmem>>, %arg2: memref<1x8x256xf32, #tpu.memory_space<vmem>>, %arg3: memref<1x16x16xf32, #tpu.memory_space<vmem>>, %arg4: memref<16x72xf32, #tpu.memory_space<vmem>>, %arg5: memref<16x1xf32, #tpu.memory_space<vmem>>, %arg6: memref<16x144xf32, #tpu.memory_space<vmem>>, %arg7: memref<16x1xf32, #tpu.memory_space<vmem>>, %arg8: memref<8x144xf32, #tpu.memory_space<vmem>>, %arg9: memref<8x1xf32, #tpu.memory_space<vmem>>, %arg10: memref<1x1x256xf32, #tpu.memory_space<vmem>>, %arg11: memref<1x8x256xf32, #tpu.memory_space<vmem>>) attributes {dimension_semantics = [#tpu.dimension_semantics<parallel>], iteration_bounds = array<i64: 2>, scalar_prefetch = 0 : i64, scratch_operands = 0 : i64, tpu.core_type = #tpu.core_type<tc>, window_params = [{pipeline_mode = #tpu.pipeline_mode<synchronous>, transform_indices = @transform_0, window_bounds = array<i64: 2, 256>}, {transform_indices = @transform_1, window_bounds = array<i64: 1, 8, 256>}, {transform_indices = @transform_2, window_bounds = array<i64: 1, 16, 16>}, {pipeline_mode = #tpu.pipeline_mode<synchronous>, transform_indices = @transform_3, window_bounds = array<i64: 16, 72>}, {pipeline_mode = #tpu.pipeline_mode<synchronous>, transform_indices = @transform_4, window_bounds = array<i64: 16, 1>}, {pipeline_mode = #tpu.pipeline_mode<synchronous>, transform_indices = @transform_5, window_bounds = array<i64: 16, 144>}, {pipeline_mode = #tpu.pipeline_mode<synchronous>, transform_indices = @transform_6, window_bounds = array<i64: 16, 1>}, {pipeline_mode = #tpu.pipeline_mode<synchronous>, transform_indices = @transform_7, window_bounds = array<i64: 8, 144>}, {pipeline_mode = #tpu.pipeline_mode<synchronous>, transform_indices = @transform_8, window_bounds = array<i64: 8, 1>}, {transform_indices = @transform_9, window_bounds = array<i64: 1, 1, 256>}, {transform_indices = @transform_10, window_bounds = array<i64: 1, 8, 256>}]} {
    %c0 = arith.constant 0 : index
    %c0_0 = arith.constant 0 : index
    %0 = vector.load %arg1[%c0, %c0_0] : memref<2x256xf32, #tpu.memory_space<vmem>>, vector<1x256xf32>
    %c1 = arith.constant 1 : index
    %c0_1 = arith.constant 0 : index
    %1 = vector.load %arg1[%c1, %c0_1] : memref<2x256xf32, #tpu.memory_space<vmem>>, vector<1x256xf32>
    %cst = arith.constant -1.000000e+00 : f32
    %2 = vector.broadcast %cst : f32 to vector<1x256xf32>
    %3 = arith.addf %0, %2 : vector<1x256xf32>
    %cst_2 = arith.constant 0.000000e+00 : f32
    %4 = vector.broadcast %cst_2 : f32 to vector<1x256xf32>
    %5 = arith.cmpf oge, %3, %4 : vector<1x256xf32>
    %cst_3 = arith.constant -1.000000e+00 : f32
    %6 = vector.broadcast %cst_3 : f32 to vector<1x256xf32>
    %7 = arith.addf %0, %6 : vector<1x256xf32>
    %cst_4 = arith.constant 1.500000e+01 : f32
    %8 = vector.broadcast %cst_4 : f32 to vector<1x256xf32>
    %9 = arith.cmpf ole, %7, %8 : vector<1x256xf32>
    %10 = arith.andi %5, %9 : vector<1x256xi1>
    %cst_5 = arith.constant -1.000000e+00 : f32
    %11 = vector.broadcast %cst_5 : f32 to vector<1x256xf32>
    %12 = arith.addf %1, %11 : vector<1x256xf32>
    %cst_6 = arith.constant 0.000000e+00 : f32
    %13 = vector.broadcast %cst_6 : f32 to vector<1x256xf32>
    %14 = arith.cmpf oge, %12, %13 : vector<1x256xf32>
    %15 = arith.andi %10, %14 : vector<1x256xi1>
    %cst_7 = arith.constant -1.000000e+00 : f32
    %16 = vector.broadcast %cst_7 : f32 to vector<1x256xf32>
    %17 = arith.addf %1, %16 : vector<1x256xf32>
    %cst_8 = arith.constant 1.500000e+01 : f32
    %18 = vector.broadcast %cst_8 : f32 to vector<1x256xf32>
    %19 = arith.cmpf ole, %17, %18 : vector<1x256xf32>
    %20 = arith.andi %15, %19 : vector<1x256xi1>
    %21 = arith.extui %20 : vector<1x256xi1> to vector<1x256xi32>
    %22 = arith.sitofp %21 : vector<1x256xi32> to vector<1x256xf32>
    %cst_9 = arith.constant -1.000000e+00 : f32
    %23 = vector.broadcast %cst_9 : f32 to vector<1x256xf32>
    %24 = arith.addf %0, %23 : vector<1x256xf32>
    %cst_10 = arith.constant 0.000000e+00 : f32
    %25 = vector.broadcast %cst_10 : f32 to vector<1x256xf32>
    %26 = arith.cmpf oge, %24, %25 : vector<1x256xf32>
    %cst_11 = arith.constant -1.000000e+00 : f32
    %27 = vector.broadcast %cst_11 : f32 to vector<1x256xf32>
    %28 = arith.addf %0, %27 : vector<1x256xf32>
    %cst_12 = arith.constant 1.500000e+01 : f32
    %29 = vector.broadcast %cst_12 : f32 to vector<1x256xf32>
    %30 = arith.cmpf ole, %28, %29 : vector<1x256xf32>
    %31 = arith.andi %26, %30 : vector<1x256xi1>
    %cst_13 = arith.constant 0.000000e+00 : f32
    %32 = vector.broadcast %cst_13 : f32 to vector<1x256xf32>
    %33 = arith.addf %1, %32 : vector<1x256xf32>
    %cst_14 = arith.constant 0.000000e+00 : f32
    %34 = vector.broadcast %cst_14 : f32 to vector<1x256xf32>
    %35 = arith.cmpf oge, %33, %34 : vector<1x256xf32>
    %36 = arith.andi %31, %35 : vector<1x256xi1>
    %cst_15 = arith.constant 0.000000e+00 : f32
    %37 = vector.broadcast %cst_15 : f32 to vector<1x256xf32>
    %38 = arith.addf %1, %37 : vector<1x256xf32>
    %cst_16 = arith.constant 1.500000e+01 : f32
    %39 = vector.broadcast %cst_16 : f32 to vector<1x256xf32>
    %40 = arith.cmpf ole, %38, %39 : vector<1x256xf32>
    %41 = arith.andi %36, %40 : vector<1x256xi1>
    %42 = arith.extui %41 : vector<1x256xi1> to vector<1x256xi32>
    %43 = arith.sitofp %42 : vector<1x256xi32> to vector<1x256xf32>
    %cst_17 = arith.constant -1.000000e+00 : f32
    %44 = vector.broadcast %cst_17 : f32 to vector<1x256xf32>
    %45 = arith.addf %0, %44 : vector<1x256xf32>
    %cst_18 = arith.constant 0.000000e+00 : f32
    %46 = vector.broadcast %cst_18 : f32 to vector<1x256xf32>
    %47 = arith.cmpf oge, %45, %46 : vector<1x256xf32>
    %cst_19 = arith.constant -1.000000e+00 : f32
    %48 = vector.broadcast %cst_19 : f32 to vector<1x256xf32>
    %49 = arith.addf %0, %48 : vector<1x256xf32>
    %cst_20 = arith.constant 1.500000e+01 : f32
    %50 = vector.broadcast %cst_20 : f32 to vector<1x256xf32>
    %51 = arith.cmpf ole, %49, %50 : vector<1x256xf32>
    %52 = arith.andi %47, %51 : vector<1x256xi1>
    %cst_21 = arith.constant 1.000000e+00 : f32
    %53 = vector.broadcast %cst_21 : f32 to vector<1x256xf32>
    %54 = arith.addf %1, %53 : vector<1x256xf32>
    %cst_22 = arith.constant 0.000000e+00 : f32
    %55 = vector.broadcast %cst_22 : f32 to vector<1x256xf32>
    %56 = arith.cmpf oge, %54, %55 : vector<1x256xf32>
    %57 = arith.andi %52, %56 : vector<1x256xi1>
    %cst_23 = arith.constant 1.000000e+00 : f32
    %58 = vector.broadcast %cst_23 : f32 to vector<1x256xf32>
    %59 = arith.addf %1, %58 : vector<1x256xf32>
    %cst_24 = arith.constant 1.500000e+01 : f32
    %60 = vector.broadcast %cst_24 : f32 to vector<1x256xf32>
    %61 = arith.cmpf ole, %59, %60 : vector<1x256xf32>
    %62 = arith.andi %57, %61 : vector<1x256xi1>
    %63 = arith.extui %62 : vector<1x256xi1> to vector<1x256xi32>
    %64 = arith.sitofp %63 : vector<1x256xi32> to vector<1x256xf32>
    %cst_25 = arith.constant 0.000000e+00 : f32
    %65 = vector.broadcast %cst_25 : f32 to vector<1x256xf32>
    %66 = arith.addf %0, %65 : vector<1x256xf32>
    %cst_26 = arith.constant 0.000000e+00 : f32
    %67 = vector.broadcast %cst_26 : f32 to vector<1x256xf32>
    %68 = arith.cmpf oge, %66, %67 : vector<1x256xf32>
    %cst_27 = arith.constant 0.000000e+00 : f32
    %69 = vector.broadcast %cst_27 : f32 to vector<1x256xf32>
    %70 = arith.addf %0, %69 : vector<1x256xf32>
    %cst_28 = arith.constant 1.500000e+01 : f32
    %71 = vector.broadcast %cst_28 : f32 to vector<1x256xf32>
    %72 = arith.cmpf ole, %70, %71 : vector<1x256xf32>
    %73 = arith.andi %68, %72 : vector<1x256xi1>
    %cst_29 = arith.constant -1.000000e+00 : f32
    %74 = vector.broadcast %cst_29 : f32 to vector<1x256xf32>
    %75 = arith.addf %1, %74 : vector<1x256xf32>
    %cst_30 = arith.constant 0.000000e+00 : f32
    %76 = vector.broadcast %cst_30 : f32 to vector<1x256xf32>
    %77 = arith.cmpf oge, %75, %76 : vector<1x256xf32>
    %78 = arith.andi %73, %77 : vector<1x256xi1>
    %cst_31 = arith.constant -1.000000e+00 : f32
    %79 = vector.broadcast %cst_31 : f32 to vector<1x256xf32>
    %80 = arith.addf %1, %79 : vector<1x256xf32>
    %cst_32 = arith.constant 1.500000e+01 : f32
    %81 = vector.broadcast %cst_32 : f32 to vector<1x256xf32>
    %82 = arith.cmpf ole, %80, %81 : vector<1x256xf32>
    %83 = arith.andi %78, %82 : vector<1x256xi1>
    %84 = arith.extui %83 : vector<1x256xi1> to vector<1x256xi32>
    %85 = arith.sitofp %84 : vector<1x256xi32> to vector<1x256xf32>
    %cst_33 = arith.constant 0.000000e+00 : f32
    %86 = vector.broadcast %cst_33 : f32 to vector<1x256xf32>
    %87 = arith.addf %0, %86 : vector<1x256xf32>
    %cst_34 = arith.constant 0.000000e+00 : f32
    %88 = vector.broadcast %cst_34 : f32 to vector<1x256xf32>
    %89 = arith.cmpf oge, %87, %88 : vector<1x256xf32>
    %cst_35 = arith.constant 0.000000e+00 : f32
    %90 = vector.broadcast %cst_35 : f32 to vector<1x256xf32>
    %91 = arith.addf %0, %90 : vector<1x256xf32>
    %cst_36 = arith.constant 1.500000e+01 : f32
    %92 = vector.broadcast %cst_36 : f32 to vector<1x256xf32>
    %93 = arith.cmpf ole, %91, %92 : vector<1x256xf32>
    %94 = arith.andi %89, %93 : vector<1x256xi1>
    %cst_37 = arith.constant 1.000000e+00 : f32
    %95 = vector.broadcast %cst_37 : f32 to vector<1x256xf32>
    %96 = arith.addf %1, %95 : vector<1x256xf32>
    %cst_38 = arith.constant 0.000000e+00 : f32
    %97 = vector.broadcast %cst_38 : f32 to vector<1x256xf32>
    %98 = arith.cmpf oge, %96, %97 : vector<1x256xf32>
    %99 = arith.andi %94, %98 : vector<1x256xi1>
    %cst_39 = arith.constant 1.000000e+00 : f32
    %100 = vector.broadcast %cst_39 : f32 to vector<1x256xf32>
    %101 = arith.addf %1, %100 : vector<1x256xf32>
    %cst_40 = arith.constant 1.500000e+01 : f32
    %102 = vector.broadcast %cst_40 : f32 to vector<1x256xf32>
    %103 = arith.cmpf ole, %101, %102 : vector<1x256xf32>
    %104 = arith.andi %99, %103 : vector<1x256xi1>
    %105 = arith.extui %104 : vector<1x256xi1> to vector<1x256xi32>
    %106 = arith.sitofp %105 : vector<1x256xi32> to vector<1x256xf32>
    %cst_41 = arith.constant 1.000000e+00 : f32
    %107 = vector.broadcast %cst_41 : f32 to vector<1x256xf32>
    %108 = arith.addf %0, %107 : vector<1x256xf32>
    %cst_42 = arith.constant 0.000000e+00 : f32
    %109 = vector.broadcast %cst_42 : f32 to vector<1x256xf32>
    %110 = arith.cmpf oge, %108, %109 : vector<1x256xf32>
    %cst_43 = arith.constant 1.000000e+00 : f32
    %111 = vector.broadcast %cst_43 : f32 to vector<1x256xf32>
    %112 = arith.addf %0, %111 : vector<1x256xf32>
    %cst_44 = arith.constant 1.500000e+01 : f32
    %113 = vector.broadcast %cst_44 : f32 to vector<1x256xf32>
    %114 = arith.cmpf ole, %112, %113 : vector<1x256xf32>
    %115 = arith.andi %110, %114 : vector<1x256xi1>
    %cst_45 = arith.constant -1.000000e+00 : f32
    %116 = vector.broadcast %cst_45 : f32 to vector<1x256xf32>
    %117 = arith.addf %1, %116 : vector<1x256xf32>
    %cst_46 = arith.constant 0.000000e+00 : f32
    %118 = vector.broadcast %cst_46 : f32 to vector<1x256xf32>
    %119 = arith.cmpf oge, %117, %118 : vector<1x256xf32>
    %120 = arith.andi %115, %119 : vector<1x256xi1>
    %cst_47 = arith.constant -1.000000e+00 : f32
    %121 = vector.broadcast %cst_47 : f32 to vector<1x256xf32>
    %122 = arith.addf %1, %121 : vector<1x256xf32>
    %cst_48 = arith.constant 1.500000e+01 : f32
    %123 = vector.broadcast %cst_48 : f32 to vector<1x256xf32>
    %124 = arith.cmpf ole, %122, %123 : vector<1x256xf32>
    %125 = arith.andi %120, %124 : vector<1x256xi1>
    %126 = arith.extui %125 : vector<1x256xi1> to vector<1x256xi32>
    %127 = arith.sitofp %126 : vector<1x256xi32> to vector<1x256xf32>
    %cst_49 = arith.constant 1.000000e+00 : f32
    %128 = vector.broadcast %cst_49 : f32 to vector<1x256xf32>
    %129 = arith.addf %0, %128 : vector<1x256xf32>
    %cst_50 = arith.constant 0.000000e+00 : f32
    %130 = vector.broadcast %cst_50 : f32 to vector<1x256xf32>
    %131 = arith.cmpf oge, %129, %130 : vector<1x256xf32>
    %cst_51 = arith.constant 1.000000e+00 : f32
    %132 = vector.broadcast %cst_51 : f32 to vector<1x256xf32>
    %133 = arith.addf %0, %132 : vector<1x256xf32>
    %cst_52 = arith.constant 1.500000e+01 : f32
    %134 = vector.broadcast %cst_52 : f32 to vector<1x256xf32>
    %135 = arith.cmpf ole, %133, %134 : vector<1x256xf32>
    %136 = arith.andi %131, %135 : vector<1x256xi1>
    %cst_53 = arith.constant 0.000000e+00 : f32
    %137 = vector.broadcast %cst_53 : f32 to vector<1x256xf32>
    %138 = arith.addf %1, %137 : vector<1x256xf32>
    %cst_54 = arith.constant 0.000000e+00 : f32
    %139 = vector.broadcast %cst_54 : f32 to vector<1x256xf32>
    %140 = arith.cmpf oge, %138, %139 : vector<1x256xf32>
    %141 = arith.andi %136, %140 : vector<1x256xi1>
    %cst_55 = arith.constant 0.000000e+00 : f32
    %142 = vector.broadcast %cst_55 : f32 to vector<1x256xf32>
    %143 = arith.addf %1, %142 : vector<1x256xf32>
    %cst_56 = arith.constant 1.500000e+01 : f32
    %144 = vector.broadcast %cst_56 : f32 to vector<1x256xf32>
    %145 = arith.cmpf ole, %143, %144 : vector<1x256xf32>
    %146 = arith.andi %141, %145 : vector<1x256xi1>
    %147 = arith.extui %146 : vector<1x256xi1> to vector<1x256xi32>
    %148 = arith.sitofp %147 : vector<1x256xi32> to vector<1x256xf32>
    %cst_57 = arith.constant 1.000000e+00 : f32
    %149 = vector.broadcast %cst_57 : f32 to vector<1x256xf32>
    %150 = arith.addf %0, %149 : vector<1x256xf32>
    %cst_58 = arith.constant 0.000000e+00 : f32
    %151 = vector.broadcast %cst_58 : f32 to vector<1x256xf32>
    %152 = arith.cmpf oge, %150, %151 : vector<1x256xf32>
    %cst_59 = arith.constant 1.000000e+00 : f32
    %153 = vector.broadcast %cst_59 : f32 to vector<1x256xf32>
    %154 = arith.addf %0, %153 : vector<1x256xf32>
    %cst_60 = arith.constant 1.500000e+01 : f32
    %155 = vector.broadcast %cst_60 : f32 to vector<1x256xf32>
    %156 = arith.cmpf ole, %154, %155 : vector<1x256xf32>
    %157 = arith.andi %152, %156 : vector<1x256xi1>
    %cst_61 = arith.constant 1.000000e+00 : f32
    %158 = vector.broadcast %cst_61 : f32 to vector<1x256xf32>
    %159 = arith.addf %1, %158 : vector<1x256xf32>
    %cst_62 = arith.constant 0.000000e+00 : f32
    %160 = vector.broadcast %cst_62 : f32 to vector<1x256xf32>
    %161 = arith.cmpf oge, %159, %160 : vector<1x256xf32>
    %162 = arith.andi %157, %161 : vector<1x256xi1>
    %cst_63 = arith.constant 1.000000e+00 : f32
    %163 = vector.broadcast %cst_63 : f32 to vector<1x256xf32>
    %164 = arith.addf %1, %163 : vector<1x256xf32>
    %cst_64 = arith.constant 1.500000e+01 : f32
    %165 = vector.broadcast %cst_64 : f32 to vector<1x256xf32>
    %166 = arith.cmpf ole, %164, %165 : vector<1x256xf32>
    %167 = arith.andi %162, %166 : vector<1x256xi1>
    %168 = arith.extui %167 : vector<1x256xi1> to vector<1x256xi32>
    %169 = arith.sitofp %168 : vector<1x256xi32> to vector<1x256xf32>
    %c0_65 = arith.constant 0 : index
    %c0_66 = arith.constant 0 : index
    %c0_67 = arith.constant 0 : index
    %170 = vector.load %arg2[%c0_65, %c0_66, %c0_67] : memref<1x8x256xf32, #tpu.memory_space<vmem>>, vector<1x8x256xf32>
    %171 = vector.shape_cast %170 : vector<1x8x256xf32> to vector<8x256xf32>
    %c17_i32 = arith.constant 17 : i32
    %172 = tpu.dynamic_rotate %171 by %c17_i32 dim 1 : vector<8x256xf32>, i32 -> vector<8x256xf32>
    %173 = vector.broadcast %22 : vector<1x256xf32> to vector<8x256xf32>
    %174 = arith.mulf %172, %173 : vector<8x256xf32>
    %c16_i32 = arith.constant 16 : i32
    %175 = tpu.dynamic_rotate %171 by %c16_i32 dim 1 : vector<8x256xf32>, i32 -> vector<8x256xf32>
    %176 = vector.broadcast %43 : vector<1x256xf32> to vector<8x256xf32>
    %177 = arith.mulf %175, %176 : vector<8x256xf32>
    %c15_i32 = arith.constant 15 : i32
    %178 = tpu.dynamic_rotate %171 by %c15_i32 dim 1 : vector<8x256xf32>, i32 -> vector<8x256xf32>
    %179 = vector.broadcast %64 : vector<1x256xf32> to vector<8x256xf32>
    %180 = arith.mulf %178, %179 : vector<8x256xf32>
    %c1_i32 = arith.constant 1 : i32
    %181 = tpu.dynamic_rotate %171 by %c1_i32 dim 1 : vector<8x256xf32>, i32 -> vector<8x256xf32>
    %182 = vector.broadcast %85 : vector<1x256xf32> to vector<8x256xf32>
    %183 = arith.mulf %181, %182 : vector<8x256xf32>
    %c255_i32 = arith.constant 255 : i32
    %184 = tpu.dynamic_rotate %171 by %c255_i32 dim 1 : vector<8x256xf32>, i32 -> vector<8x256xf32>
    %185 = vector.broadcast %106 : vector<1x256xf32> to vector<8x256xf32>
    %186 = arith.mulf %184, %185 : vector<8x256xf32>
    %c241_i32 = arith.constant 241 : i32
    %187 = tpu.dynamic_rotate %171 by %c241_i32 dim 1 : vector<8x256xf32>, i32 -> vector<8x256xf32>
    %188 = vector.broadcast %127 : vector<1x256xf32> to vector<8x256xf32>
    %189 = arith.mulf %187, %188 : vector<8x256xf32>
    %c240_i32 = arith.constant 240 : i32
    %190 = tpu.dynamic_rotate %171 by %c240_i32 dim 1 : vector<8x256xf32>, i32 -> vector<8x256xf32>
    %191 = vector.broadcast %148 : vector<1x256xf32> to vector<8x256xf32>
    %192 = arith.mulf %190, %191 : vector<8x256xf32>
    %c239_i32 = arith.constant 239 : i32
    %193 = tpu.dynamic_rotate %171 by %c239_i32 dim 1 : vector<8x256xf32>, i32 -> vector<8x256xf32>
    %194 = vector.broadcast %169 : vector<1x256xf32> to vector<8x256xf32>
    %195 = arith.mulf %193, %194 : vector<8x256xf32>
    %196 = tpu.concatenate %174, %177, %180, %183, %171, %186, %189, %192, %195 in 0 : vector<8x256xf32>, vector<8x256xf32>, vector<8x256xf32>, vector<8x256xf32>, vector<8x256xf32>, vector<8x256xf32>, vector<8x256xf32>, vector<8x256xf32>, vector<8x256xf32> -> vector<72x256xf32>
    %c0_68 = arith.constant 0 : index
    %c0_69 = arith.constant 0 : index
    %197 = vector.load %arg4[%c0_68, %c0_69] : memref<16x72xf32, #tpu.memory_space<vmem>>, vector<16x72xf32>
    %cst_70 = arith.constant dense<0.000000e+00> : vector<16x256xf32>
    %198 = tpu.matmul %197, %196, %cst_70 {dimension_numbers = #tpu.dot_dimension_numbers<[1], [0], [0], [1], [0, 0, 1, 1], [], []>} : vector<16x72xf32>, vector<72x256xf32>, vector<16x256xf32> -> vector<16x256xf32>
    %c0_71 = arith.constant 0 : index
    %c0_72 = arith.constant 0 : index
    %199 = vector.load %arg5[%c0_71, %c0_72] : memref<16x1xf32, #tpu.memory_space<vmem>>, vector<16x1xf32>
    %200 = vector.broadcast %199 : vector<16x1xf32> to vector<16x256xf32>
    %201 = arith.addf %198, %200 : vector<16x256xf32>
    %cst_73 = arith.constant 0.000000e+00 : f32
    %202 = vector.broadcast %cst_73 : f32 to vector<16x256xf32>
    %203 = arith.cmpf oge, %201, %202 : vector<16x256xf32>
    %cst_74 = arith.constant 2.000000e-01 : f32
    %204 = vector.broadcast %cst_74 : f32 to vector<16x256xf32>
    %205 = arith.mulf %204, %201 : vector<16x256xf32>
    %206 = arith.select %203, %201, %205 : vector<16x256xi1>, vector<16x256xf32>
    %c17_i32_75 = arith.constant 17 : i32
    %207 = tpu.dynamic_rotate %206 by %c17_i32_75 dim 1 : vector<16x256xf32>, i32 -> vector<16x256xf32>
    %208 = vector.broadcast %22 : vector<1x256xf32> to vector<16x256xf32>
    %209 = arith.mulf %207, %208 : vector<16x256xf32>
    %c16_i32_76 = arith.constant 16 : i32
    %210 = tpu.dynamic_rotate %206 by %c16_i32_76 dim 1 : vector<16x256xf32>, i32 -> vector<16x256xf32>
    %211 = vector.broadcast %43 : vector<1x256xf32> to vector<16x256xf32>
    %212 = arith.mulf %210, %211 : vector<16x256xf32>
    %c15_i32_77 = arith.constant 15 : i32
    %213 = tpu.dynamic_rotate %206 by %c15_i32_77 dim 1 : vector<16x256xf32>, i32 -> vector<16x256xf32>
    %214 = vector.broadcast %64 : vector<1x256xf32> to vector<16x256xf32>
    %215 = arith.mulf %213, %214 : vector<16x256xf32>
    %c1_i32_78 = arith.constant 1 : i32
    %216 = tpu.dynamic_rotate %206 by %c1_i32_78 dim 1 : vector<16x256xf32>, i32 -> vector<16x256xf32>
    %217 = vector.broadcast %85 : vector<1x256xf32> to vector<16x256xf32>
    %218 = arith.mulf %216, %217 : vector<16x256xf32>
    %c255_i32_79 = arith.constant 255 : i32
    %219 = tpu.dynamic_rotate %206 by %c255_i32_79 dim 1 : vector<16x256xf32>, i32 -> vector<16x256xf32>
    %220 = vector.broadcast %106 : vector<1x256xf32> to vector<16x256xf32>
    %221 = arith.mulf %219, %220 : vector<16x256xf32>
    %c241_i32_80 = arith.constant 241 : i32
    %222 = tpu.dynamic_rotate %206 by %c241_i32_80 dim 1 : vector<16x256xf32>, i32 -> vector<16x256xf32>
    %223 = vector.broadcast %127 : vector<1x256xf32> to vector<16x256xf32>
    %224 = arith.mulf %222, %223 : vector<16x256xf32>
    %c240_i32_81 = arith.constant 240 : i32
    %225 = tpu.dynamic_rotate %206 by %c240_i32_81 dim 1 : vector<16x256xf32>, i32 -> vector<16x256xf32>
    %226 = vector.broadcast %148 : vector<1x256xf32> to vector<16x256xf32>
    %227 = arith.mulf %225, %226 : vector<16x256xf32>
    %c239_i32_82 = arith.constant 239 : i32
    %228 = tpu.dynamic_rotate %206 by %c239_i32_82 dim 1 : vector<16x256xf32>, i32 -> vector<16x256xf32>
    %229 = vector.broadcast %169 : vector<1x256xf32> to vector<16x256xf32>
    %230 = arith.mulf %228, %229 : vector<16x256xf32>
    %231 = tpu.concatenate %209, %212, %215, %218, %206, %221, %224, %227, %230 in 0 : vector<16x256xf32>, vector<16x256xf32>, vector<16x256xf32>, vector<16x256xf32>, vector<16x256xf32>, vector<16x256xf32>, vector<16x256xf32>, vector<16x256xf32>, vector<16x256xf32> -> vector<144x256xf32>
    %c0_83 = arith.constant 0 : index
    %c0_84 = arith.constant 0 : index
    %232 = vector.load %arg6[%c0_83, %c0_84] : memref<16x144xf32, #tpu.memory_space<vmem>>, vector<16x144xf32>
    %cst_85 = arith.constant dense<0.000000e+00> : vector<16x256xf32>
    %233 = tpu.matmul %232, %231, %cst_85 {dimension_numbers = #tpu.dot_dimension_numbers<[1], [0], [0], [1], [0, 0, 1, 1], [], []>} : vector<16x144xf32>, vector<144x256xf32>, vector<16x256xf32> -> vector<16x256xf32>
    %c0_86 = arith.constant 0 : index
    %c0_87 = arith.constant 0 : index
    %234 = vector.load %arg7[%c0_86, %c0_87] : memref<16x1xf32, #tpu.memory_space<vmem>>, vector<16x1xf32>
    %235 = vector.broadcast %234 : vector<16x1xf32> to vector<16x256xf32>
    %236 = arith.addf %233, %235 : vector<16x256xf32>
    %cst_88 = arith.constant 0.000000e+00 : f32
    %237 = vector.broadcast %cst_88 : f32 to vector<16x256xf32>
    %238 = arith.cmpf oge, %236, %237 : vector<16x256xf32>
    %cst_89 = arith.constant 2.000000e-01 : f32
    %239 = vector.broadcast %cst_89 : f32 to vector<16x256xf32>
    %240 = arith.mulf %239, %236 : vector<16x256xf32>
    %241 = arith.select %238, %236, %240 : vector<16x256xi1>, vector<16x256xf32>
    %c17_i32_90 = arith.constant 17 : i32
    %242 = tpu.dynamic_rotate %241 by %c17_i32_90 dim 1 : vector<16x256xf32>, i32 -> vector<16x256xf32>
    %243 = vector.broadcast %22 : vector<1x256xf32> to vector<16x256xf32>
    %244 = arith.mulf %242, %243 : vector<16x256xf32>
    %c16_i32_91 = arith.constant 16 : i32
    %245 = tpu.dynamic_rotate %241 by %c16_i32_91 dim 1 : vector<16x256xf32>, i32 -> vector<16x256xf32>
    %246 = vector.broadcast %43 : vector<1x256xf32> to vector<16x256xf32>
    %247 = arith.mulf %245, %246 : vector<16x256xf32>
    %c15_i32_92 = arith.constant 15 : i32
    %248 = tpu.dynamic_rotate %241 by %c15_i32_92 dim 1 : vector<16x256xf32>, i32 -> vector<16x256xf32>
    %249 = vector.broadcast %64 : vector<1x256xf32> to vector<16x256xf32>
    %250 = arith.mulf %248, %249 : vector<16x256xf32>
    %c1_i32_93 = arith.constant 1 : i32
    %251 = tpu.dynamic_rotate %241 by %c1_i32_93 dim 1 : vector<16x256xf32>, i32 -> vector<16x256xf32>
    %252 = vector.broadcast %85 : vector<1x256xf32> to vector<16x256xf32>
    %253 = arith.mulf %251, %252 : vector<16x256xf32>
    %c255_i32_94 = arith.constant 255 : i32
    %254 = tpu.dynamic_rotate %241 by %c255_i32_94 dim 1 : vector<16x256xf32>, i32 -> vector<16x256xf32>
    %255 = vector.broadcast %106 : vector<1x256xf32> to vector<16x256xf32>
    %256 = arith.mulf %254, %255 : vector<16x256xf32>
    %c241_i32_95 = arith.constant 241 : i32
    %257 = tpu.dynamic_rotate %241 by %c241_i32_95 dim 1 : vector<16x256xf32>, i32 -> vector<16x256xf32>
    %258 = vector.broadcast %127 : vector<1x256xf32> to vector<16x256xf32>
    %259 = arith.mulf %257, %258 : vector<16x256xf32>
    %c240_i32_96 = arith.constant 240 : i32
    %260 = tpu.dynamic_rotate %241 by %c240_i32_96 dim 1 : vector<16x256xf32>, i32 -> vector<16x256xf32>
    %261 = vector.broadcast %148 : vector<1x256xf32> to vector<16x256xf32>
    %262 = arith.mulf %260, %261 : vector<16x256xf32>
    %c239_i32_97 = arith.constant 239 : i32
    %263 = tpu.dynamic_rotate %241 by %c239_i32_97 dim 1 : vector<16x256xf32>, i32 -> vector<16x256xf32>
    %264 = vector.broadcast %169 : vector<1x256xf32> to vector<16x256xf32>
    %265 = arith.mulf %263, %264 : vector<16x256xf32>
    %266 = tpu.concatenate %244, %247, %250, %253, %241, %256, %259, %262, %265 in 0 : vector<16x256xf32>, vector<16x256xf32>, vector<16x256xf32>, vector<16x256xf32>, vector<16x256xf32>, vector<16x256xf32>, vector<16x256xf32>, vector<16x256xf32>, vector<16x256xf32> -> vector<144x256xf32>
    %c0_98 = arith.constant 0 : index
    %c0_99 = arith.constant 0 : index
    %267 = vector.load %arg8[%c0_98, %c0_99] : memref<8x144xf32, #tpu.memory_space<vmem>>, vector<8x144xf32>
    %cst_100 = arith.constant dense<0.000000e+00> : vector<8x256xf32>
    %268 = tpu.matmul %267, %266, %cst_100 {dimension_numbers = #tpu.dot_dimension_numbers<[1], [0], [0], [1], [0, 0, 1, 1], [], []>} : vector<8x144xf32>, vector<144x256xf32>, vector<8x256xf32> -> vector<8x256xf32>
    %c0_101 = arith.constant 0 : index
    %c0_102 = arith.constant 0 : index
    %269 = vector.load %arg9[%c0_101, %c0_102] : memref<8x1xf32, #tpu.memory_space<vmem>>, vector<8x1xf32>
    %270 = vector.broadcast %269 : vector<8x1xf32> to vector<8x256xf32>
    %271 = arith.addf %268, %270 : vector<8x256xf32>
    %272 = vector.extract_strided_slice %271 {offsets = [0, 0], sizes = [1, 256], strides = [1, 1]} : vector<8x256xf32> to vector<1x256xf32>
    %273 = arith.addf %0, %272 : vector<1x256xf32>
    %274 = vector.extract_strided_slice %271 {offsets = [1, 0], sizes = [1, 256], strides = [1, 1]} : vector<8x256xf32> to vector<1x256xf32>
    %275 = arith.addf %1, %274 : vector<1x256xf32>
    %276 = math.floor %273 : vector<1x256xf32>
    %277 = math.floor %275 : vector<1x256xf32>
    %278 = arith.subf %273, %276 : vector<1x256xf32>
    %279 = arith.subf %275, %277 : vector<1x256xf32>
    %280 = tpu.iota {dimensions = array<i32: 0>} : vector<16x1xi32>
    %cst_103 = arith.constant 1.000000e+00 : f32
    %281 = vector.broadcast %cst_103 : f32 to vector<1x256xf32>
    %282 = arith.subf %281, %278 : vector<1x256xf32>
    %cst_104 = arith.constant 1.000000e+00 : f32
    %283 = vector.broadcast %cst_104 : f32 to vector<1x256xf32>
    %284 = arith.addf %276, %283 : vector<1x256xf32>
    %cst_105 = arith.constant 0.000000e+00 : f32
    %285 = vector.broadcast %cst_105 : f32 to vector<1x256xf32>
    %286 = arith.cmpf oge, %276, %285 : vector<1x256xf32>
    %cst_106 = arith.constant 1.500000e+01 : f32
    %287 = vector.broadcast %cst_106 : f32 to vector<1x256xf32>
    %288 = arith.cmpf ole, %276, %287 : vector<1x256xf32>
    %289 = arith.andi %286, %288 : vector<1x256xi1>
    %290 = arith.extui %289 : vector<1x256xi1> to vector<1x256xi32>
    %291 = arith.sitofp %290 : vector<1x256xi32> to vector<1x256xf32>
    %cst_107 = arith.constant 0.000000e+00 : f32
    %cst_108 = arith.constant 1.500000e+01 : f32
    %292 = vector.broadcast %cst_107 : f32 to vector<1x256xf32>
    %293 = arith.maximumf %292, %276 : vector<1x256xf32>
    %294 = vector.broadcast %cst_108 : f32 to vector<1x256xf32>
    %295 = arith.minimumf %294, %293 : vector<1x256xf32>
    %296 = arith.fptosi %295 : vector<1x256xf32> to vector<1x256xi32>
    %297 = arith.mulf %282, %291 : vector<1x256xf32>
    %298 = vector.broadcast %280 : vector<16x1xi32> to vector<16x256xi32>
    %299 = vector.broadcast %296 : vector<1x256xi32> to vector<16x256xi32>
    %300 = arith.cmpi eq, %298, %299 : vector<16x256xi32>
    %301 = arith.extui %300 : vector<16x256xi1> to vector<16x256xi32>
    %302 = arith.sitofp %301 : vector<16x256xi32> to vector<16x256xf32>
    %303 = vector.broadcast %297 : vector<1x256xf32> to vector<16x256xf32>
    %304 = arith.mulf %303, %302 : vector<16x256xf32>
    %cst_109 = arith.constant 0.000000e+00 : f32
    %305 = vector.broadcast %cst_109 : f32 to vector<1x256xf32>
    %306 = arith.cmpf oge, %284, %305 : vector<1x256xf32>
    %cst_110 = arith.constant 1.500000e+01 : f32
    %307 = vector.broadcast %cst_110 : f32 to vector<1x256xf32>
    %308 = arith.cmpf ole, %284, %307 : vector<1x256xf32>
    %309 = arith.andi %306, %308 : vector<1x256xi1>
    %310 = arith.extui %309 : vector<1x256xi1> to vector<1x256xi32>
    %311 = arith.sitofp %310 : vector<1x256xi32> to vector<1x256xf32>
    %cst_111 = arith.constant 0.000000e+00 : f32
    %cst_112 = arith.constant 1.500000e+01 : f32
    %312 = vector.broadcast %cst_111 : f32 to vector<1x256xf32>
    %313 = arith.maximumf %312, %284 : vector<1x256xf32>
    %314 = vector.broadcast %cst_112 : f32 to vector<1x256xf32>
    %315 = arith.minimumf %314, %313 : vector<1x256xf32>
    %316 = arith.fptosi %315 : vector<1x256xf32> to vector<1x256xi32>
    %317 = arith.mulf %278, %311 : vector<1x256xf32>
    %318 = vector.broadcast %280 : vector<16x1xi32> to vector<16x256xi32>
    %319 = vector.broadcast %316 : vector<1x256xi32> to vector<16x256xi32>
    %320 = arith.cmpi eq, %318, %319 : vector<16x256xi32>
    %321 = arith.extui %320 : vector<16x256xi1> to vector<16x256xi32>
    %322 = arith.sitofp %321 : vector<16x256xi32> to vector<16x256xf32>
    %323 = vector.broadcast %317 : vector<1x256xf32> to vector<16x256xf32>
    %324 = arith.mulf %323, %322 : vector<16x256xf32>
    %325 = arith.addf %304, %324 : vector<16x256xf32>
    %326 = tpu.iota {dimensions = array<i32: 0>} : vector<16x1xi32>
    %cst_113 = arith.constant 1.000000e+00 : f32
    %327 = vector.broadcast %cst_113 : f32 to vector<1x256xf32>
    %328 = arith.subf %327, %279 : vector<1x256xf32>
    %cst_114 = arith.constant 1.000000e+00 : f32
    %329 = vector.broadcast %cst_114 : f32 to vector<1x256xf32>
    %330 = arith.addf %277, %329 : vector<1x256xf32>
    %cst_115 = arith.constant 0.000000e+00 : f32
    %331 = vector.broadcast %cst_115 : f32 to vector<1x256xf32>
    %332 = arith.cmpf oge, %277, %331 : vector<1x256xf32>
    %cst_116 = arith.constant 1.500000e+01 : f32
    %333 = vector.broadcast %cst_116 : f32 to vector<1x256xf32>
    %334 = arith.cmpf ole, %277, %333 : vector<1x256xf32>
    %335 = arith.andi %332, %334 : vector<1x256xi1>
    %336 = arith.extui %335 : vector<1x256xi1> to vector<1x256xi32>
    %337 = arith.sitofp %336 : vector<1x256xi32> to vector<1x256xf32>
    %cst_117 = arith.constant 0.000000e+00 : f32
    %cst_118 = arith.constant 1.500000e+01 : f32
    %338 = vector.broadcast %cst_117 : f32 to vector<1x256xf32>
    %339 = arith.maximumf %338, %277 : vector<1x256xf32>
    %340 = vector.broadcast %cst_118 : f32 to vector<1x256xf32>
    %341 = arith.minimumf %340, %339 : vector<1x256xf32>
    %342 = arith.fptosi %341 : vector<1x256xf32> to vector<1x256xi32>
    %343 = arith.mulf %328, %337 : vector<1x256xf32>
    %344 = vector.broadcast %326 : vector<16x1xi32> to vector<16x256xi32>
    %345 = vector.broadcast %342 : vector<1x256xi32> to vector<16x256xi32>
    %346 = arith.cmpi eq, %344, %345 : vector<16x256xi32>
    %347 = arith.extui %346 : vector<16x256xi1> to vector<16x256xi32>
    %348 = arith.sitofp %347 : vector<16x256xi32> to vector<16x256xf32>
    %349 = vector.broadcast %343 : vector<1x256xf32> to vector<16x256xf32>
    %350 = arith.mulf %349, %348 : vector<16x256xf32>
    %cst_119 = arith.constant 0.000000e+00 : f32
    %351 = vector.broadcast %cst_119 : f32 to vector<1x256xf32>
    %352 = arith.cmpf oge, %330, %351 : vector<1x256xf32>
    %cst_120 = arith.constant 1.500000e+01 : f32
    %353 = vector.broadcast %cst_120 : f32 to vector<1x256xf32>
    %354 = arith.cmpf ole, %330, %353 : vector<1x256xf32>
    %355 = arith.andi %352, %354 : vector<1x256xi1>
    %356 = arith.extui %355 : vector<1x256xi1> to vector<1x256xi32>
    %357 = arith.sitofp %356 : vector<1x256xi32> to vector<1x256xf32>
    %cst_121 = arith.constant 0.000000e+00 : f32
    %cst_122 = arith.constant 1.500000e+01 : f32
    %358 = vector.broadcast %cst_121 : f32 to vector<1x256xf32>
    %359 = arith.maximumf %358, %330 : vector<1x256xf32>
    %360 = vector.broadcast %cst_122 : f32 to vector<1x256xf32>
    %361 = arith.minimumf %360, %359 : vector<1x256xf32>
    %362 = arith.fptosi %361 : vector<1x256xf32> to vector<1x256xi32>
    %363 = arith.mulf %279, %357 : vector<1x256xf32>
    %364 = vector.broadcast %326 : vector<16x1xi32> to vector<16x256xi32>
    %365 = vector.broadcast %362 : vector<1x256xi32> to vector<16x256xi32>
    %366 = arith.cmpi eq, %364, %365 : vector<16x256xi32>
    %367 = arith.extui %366 : vector<16x256xi1> to vector<16x256xi32>
    %368 = arith.sitofp %367 : vector<16x256xi32> to vector<16x256xf32>
    %369 = vector.broadcast %363 : vector<1x256xf32> to vector<16x256xf32>
    %370 = arith.mulf %369, %368 : vector<16x256xf32>
    %371 = arith.addf %350, %370 : vector<16x256xf32>
    %c0_123 = arith.constant 0 : index
    %c0_124 = arith.constant 0 : index
    %c0_125 = arith.constant 0 : index
    %372 = vector.load %arg3[%c0_123, %c0_124, %c0_125] : memref<1x16x16xf32, #tpu.memory_space<vmem>>, vector<1x16x16xf32>
    %373 = vector.shape_cast %372 : vector<1x16x16xf32> to vector<16x16xf32>
    %cst_126 = arith.constant dense<0.000000e+00> : vector<16x256xf32>
    %374 = tpu.matmul %373, %325, %cst_126 {dimension_numbers = #tpu.dot_dimension_numbers<[1], [0], [0], [1], [0, 0, 1, 1], [], []>} : vector<16x16xf32>, vector<16x256xf32>, vector<16x256xf32> -> vector<16x256xf32>
    %375 = arith.mulf %371, %374 : vector<16x256xf32>
    %cst_127 = arith.constant dense<0.000000e+00> : vector<256xf32>
    %376 = vector.multi_reduction <add>, %375, %cst_127 [0] : vector<16x256xf32> to vector<256xf32>
    %377 = vector.shape_cast %376 : vector<256xf32> to vector<1x256xf32>
    %c0_128 = arith.constant 0 : index
    %c0_129 = arith.constant 0 : index
    %c0_130 = arith.constant 0 : index
    %378 = vector.load %arg10[%c0_128, %c0_129, %c0_130] : memref<1x1x256xf32, #tpu.memory_space<vmem>>, vector<1x1x256xf32>
    %379 = vector.shape_cast %378 : vector<1x1x256xf32> to vector<1x256xf32>
    %380 = vector.shape_cast %377 : vector<1x256xf32> to vector<1x1x256xf32>
    tpu.vector_store %arg10[%c0_128, %c0_129, %c0_130], %380 {strides = array<i32>} : memref<1x1x256xf32, #tpu.memory_space<vmem>>, vector<1x1x256xf32>,
    %c0_131 = arith.constant 0 : index
    %c0_132 = arith.constant 0 : index
    %c0_133 = arith.constant 0 : index
    %381 = vector.load %arg11[%c0_131, %c0_132, %c0_133] : memref<1x8x256xf32, #tpu.memory_space<vmem>>, vector<1x8x256xf32>
    %382 = vector.shape_cast %381 : vector<1x8x256xf32> to vector<8x256xf32>
    %383 = vector.shape_cast %271 : vector<8x256xf32> to vector<1x8x256xf32>
    tpu.vector_store %arg11[%c0_131, %c0_132, %c0_133], %383 {strides = array<i32>} : memref<1x8x256xf32, #tpu.memory_space<vmem>>, vector<1x8x256xf32>,
    return
  }
  func.func @transform_0(%arg0: i32) -> (i32, i32) {
    %c0_i32 = arith.constant 0 : i32
    %c0_i32_0 = arith.constant 0 : i32
    %c0_i32_1 = arith.constant 0 : i32
    return %c0_i32, %c0_i32_0 : i32, i32
  }
  func.func @transform_1(%arg0: i32) -> (i32, i32, i32) {
    %c0_i32 = arith.constant 0 : i32
    %c0_i32_0 = arith.constant 0 : i32
    %c0_i32_1 = arith.constant 0 : i32
    return %arg0, %c0_i32, %c0_i32_0 : i32, i32, i32
  }
  func.func @transform_2(%arg0: i32) -> (i32, i32, i32) {
    %c0_i32 = arith.constant 0 : i32
    %c0_i32_0 = arith.constant 0 : i32
    %c0_i32_1 = arith.constant 0 : i32
    return %arg0, %c0_i32, %c0_i32_0 : i32, i32, i32
  }
  func.func @transform_3(%arg0: i32) -> (i32, i32) {
    %c0_i32 = arith.constant 0 : i32
    %c0_i32_0 = arith.constant 0 : i32
    %c0_i32_1 = arith.constant 0 : i32
    return %c0_i32, %c0_i32_0 : i32, i32
  }
  func.func @transform_4(%arg0: i32) -> (i32, i32) {
    %c0_i32 = arith.constant 0 : i32
    %c0_i32_0 = arith.constant 0 : i32
    %c0_i32_1 = arith.constant 0 : i32
    return %c0_i32, %c0_i32_0 : i32, i32
  }
  func.func @transform_5(%arg0: i32) -> (i32, i32) {
    %c0_i32 = arith.constant 0 : i32
    %c0_i32_0 = arith.constant 0 : i32
    %c0_i32_1 = arith.constant 0 : i32
    return %c0_i32, %c0_i32_0 : i32, i32
  }
  func.func @transform_6(%arg0: i32) -> (i32, i32) {
    %c0_i32 = arith.constant 0 : i32
    %c0_i32_0 = arith.constant 0 : i32
    %c0_i32_1 = arith.constant 0 : i32
    return %c0_i32, %c0_i32_0 : i32, i32
  }
  func.func @transform_7(%arg0: i32) -> (i32, i32) {
    %c0_i32 = arith.constant 0 : i32
    %c0_i32_0 = arith.constant 0 : i32
    %c0_i32_1 = arith.constant 0 : i32
    return %c0_i32, %c0_i32_0 : i32, i32
  }
  func.func @transform_8(%arg0: i32) -> (i32, i32) {
    %c0_i32 = arith.constant 0 : i32
    %c0_i32_0 = arith.constant 0 : i32
    %c0_i32_1 = arith.constant 0 : i32
    return %c0_i32, %c0_i32_0 : i32, i32
  }
  func.func @transform_9(%arg0: i32) -> (i32, i32, i32) {
    %c0_i32 = arith.constant 0 : i32
    %c0_i32_0 = arith.constant 0 : i32
    %c0_i32_1 = arith.constant 0 : i32
    return %arg0, %c0_i32, %c0_i32_0 : i32, i32, i32
  }
  func.func @transform_10(%arg0: i32) -> (i32, i32, i32) {
    %c0_i32 = arith.constant 0 : i32
    %c0_i32_0 = arith.constant 0 : i32
    %c0_i32_1 = arith.constant 0 : i32
    return %arg0, %c0_i32, %c0_i32_0 : i32, i32, i32
  }
}

</mosaic_0001>

<llo_original>
// kernel: voxel_model_forward.1
$region0: #{voxel_model_forward.1}
  #allocation0 [shape = 'u32[]', space=smem, size = 0x4, offset = 0x4, fixed_abs, tag = 'smem constant byte address 0x4 - core index']
  #allocation1 [shape = 'u32[144,128]{1,0:T(1,128)}', space=vmem, size = 0x12000, scoped, tag = 'internal scratch']
  %s0 = inlined_call_operand.vmem [shape: f32[2,256], index: 0, kind: input, shape index: {}]
  %s1 = inlined_call_operand.vmem [shape: f32[2,8,256], index: 1, kind: input, shape index: {}]
  %s2 = inlined_call_operand.vmem [shape: f32[2,16,16], index: 2, kind: input, shape index: {}]
  %s3 = inlined_call_operand.vmem [shape: f32[16,72], index: 3, kind: input, shape index: {}]
  %s4 = inlined_call_operand.vmem [shape: f32[16,1], index: 4, kind: input, shape index: {}]
  %s5 = inlined_call_operand.vmem [shape: f32[16,144], index: 5, kind: input, shape index: {}]
  %s6 = inlined_call_operand.vmem [shape: f32[16,1], index: 6, kind: input, shape index: {}]
  %s7 = inlined_call_operand.vmem [shape: f32[8,144], index: 7, kind: input, shape index: {}]
  %s8 = inlined_call_operand.vmem [shape: f32[8,1], index: 8, kind: input, shape index: {}]
  %s9 = inlined_call_operand.vmem [shape: f32[2,1,256], index: 9, kind: output, shape index: {0}]
  %s10 = inlined_call_operand.vmem [shape: f32[2,8,256], index: 10, kind: output, shape index: {1}]
  %11 = xla_tuple %s9, %s10
  %s12 = sld [smem:[#allocation0]]
  $region77: #{voxel_model_forward.1} parent=0
    _
  %s14 = ssub.s32 1, %s12
  %s15 = scalar_select 0, %s14, %s12
  loop: start=0, step=1, limit=4
  $region2: #{voxel_model_forward.1} parent=0 // loop_pre_header
    _
  $region3: #{voxel_model_forward.1} parent=0 // loop_header
    %s17 = sphi 0, %s21
    %p18 = scmp.ge.s32.totalorder %s17, 4
    %s25 = sphi 0, %s25
    %s27 = sphi 0, %s25
    %s28 = sphi 0, %s27
    %s42 = sphi 0, %s28
    %s48 = sphi 0, %s50
    %s51 = sphi 0, %s48
    %s52 = sphi 0, %s51
    %s68 = sphi 0, %s52
    %s74 = sphi 0, %s76
    %s77 = sphi 0, %s74
    %s78 = sphi 0, %s77
    %s94 = sphi 0, %s78
    %s98 = sphi 0, %s98
    %s100 = sphi 0, %s98
    %s101 = sphi 0, %s100
    %s115 = sphi 0, %s101
    %s119 = sphi 0, %s119
    %s121 = sphi 0, %s119
    %s122 = sphi 0, %s121
    %s136 = sphi 0, %s122
    %s140 = sphi 0, %s140
    %s142 = sphi 0, %s140
    %s143 = sphi 0, %s142
    %s157 = sphi 0, %s143
    %s161 = sphi 0, %s161
    %s163 = sphi 0, %s161
    %s164 = sphi 0, %s163
    %s178 = sphi 0, %s164
    %s182 = sphi 0, %s182
    %s184 = sphi 0, %s182
    %s185 = sphi 0, %s184
    %s199 = sphi 0, %s185
    %s203 = sphi 0, %s203
    %s205 = sphi 0, %s203
    %s206 = sphi 0, %s205
    %s220 = sphi 0, %s206
    %s226 = sphi 0, %s228
    %s229 = sphi 0, %s226
    %s230 = sphi 0, %s229
    %s246 = sphi 0, %s230
    %s252 = sphi 0, %s254
    %s255 = sphi 0, %s252
    %s256 = sphi 0, %s255
    %s272 = sphi 0, %s256
  $region4: #{voxel_model_forward.1} parent=0 // loop_header_branch
    %20 = sbr.rel (%p18) target = $region8
  $region5: #{voxel_model_forward.1} parent=0 // loop_body
    %s22 = ssub.s32 %s17, 1
    %s23 = ssub.s32 %s17, 2
    %s24 = sadd.s32 %s17, 1
    %s26 = sadd.s32 %s25, 1
    %p29 = scmp.eq.s32.totalorder %s17, 1
    %p30 = scmp.ne.s32.totalorder %s25, %s27
    %p31 = scmp.eq.s32.totalorder %s17, 0
    %p32 = por %p30, %p31
    %p33 = scmp.ne.s32.totalorder %s25, %s27
    %p34 = scmp.eq.s32.totalorder %s22, 1
    %p35 = por %p33, %p34
    %p36 = scmp.ne.s32.totalorder %s27, %s28
    %p37 = scmp.eq.s32.totalorder %s22, 0
    %p38 = por %p36, %p37
    %p39 = scmp.ne.s32.totalorder %s27, %s28
    %p40 = scmp.eq.s32.totalorder %s23, 1
    %p41 = por %p39, %p40
    %p43 = scmp.ne.s32.totalorder %s28, %s42
    %p44 = scmp.eq.s32.totalorder %s23, 0
    %p45 = por %p43, %p44
    %s46 = ssub.s32 %s17, %s24
    %p47 = scmp.eq.s32.totalorder %s46, 0
    %s49 = sadd.s32 %s48, 1
    %s50 = scalar_select %p47, %s48, %s49
    %p53 = pneg %p47
    %p54 = scmp.eq.s32.totalorder %s17, 1
    %p55 = por %p53, %p54
    %p56 = scmp.ne.s32.totalorder %s48, %s51
    %p57 = scmp.eq.s32.totalorder %s17, 0
    %p58 = por %p56, %p57
    %p59 = scmp.ne.s32.totalorder %s48, %s51
    %p60 = scmp.eq.s32.totalorder %s22, 1
    %p61 = por %p59, %p60
    %p62 = scmp.ne.s32.totalorder %s51, %s52
    %p63 = scmp.eq.s32.totalorder %s22, 0
    %p64 = por %p62, %p63
    %p65 = scmp.ne.s32.totalorder %s51, %s52
    %p66 = scmp.eq.s32.totalorder %s23, 1
    %p67 = por %p65, %p66
    %p69 = scmp.ne.s32.totalorder %s52, %s68
    %p70 = scmp.eq.s32.totalorder %s23, 0
    %p71 = por %p69, %p70
    %s72 = ssub.s32 %s17, %s24
    %p73 = scmp.eq.s32.totalorder %s72, 0
    %s75 = sadd.s32 %s74, 1
    %s76 = scalar_select %p73, %s74, %s75
    %p79 = pneg %p73
    %p80 = scmp.eq.s32.totalorder %s17, 1
    %p81 = por %p79, %p80
    %p82 = scmp.ne.s32.totalorder %s74, %s77
    %p83 = scmp.eq.s32.totalorder %s17, 0
    %p84 = por %p82, %p83
    %p85 = scmp.ne.s32.totalorder %s74, %s77
    %p86 = scmp.eq.s32.totalorder %s22, 1
    %p87 = por %p85, %p86
    %p88 = scmp.ne.s32.totalorder %s77, %s78
    %p89 = scmp.eq.s32.totalorder %s22, 0
    %p90 = por %p88, %p89
    %p91 = scmp.ne.s32.totalorder %s77, %s78
    %p92 = scmp.eq.s32.totalorder %s23, 1
    %p93 = por %p91, %p92
    %p95 = scmp.ne.s32.totalorder %s78, %s94
    %p96 = scmp.eq.s32.totalorder %s23, 0
    %p97 = por %p95, %p96
    %s99 = sadd.s32 %s98, 1
    %p102 = scmp.eq.s32.totalorder %s17, 1
    %p103 = scmp.ne.s32.totalorder %s98, %s100
    %p104 = scmp.eq.s32.totalorder %s17, 0
    %p105 = por %p103, %p104
    %p106 = scmp.ne.s32.totalorder %s98, %s100
    %p107 = scmp.eq.s32.totalorder %s22, 1
    %p108 = por %p106, %p107
    %p109 = scmp.ne.s32.totalorder %s100, %s101
    %p110 = scmp.eq.s32.totalorder %s22, 0
    %p111 = por %p109, %p110
    %p112 = scmp.ne.s32.totalorder %s100, %s101
    %p113 = scmp.eq.s32.totalorder %s23, 1
    %p114 = por %p112, %p113
    %p116 = scmp.ne.s32.totalorder %s101, %s115
    %p117 = scmp.eq.s32.totalorder %s23, 0
    %p118 = por %p116, %p117
    %s120 = sadd.s32 %s119, 1
    %p123 = scmp.eq.s32.totalorder %s17, 1
    %p124 = scmp.ne.s32.totalorder %s119, %s121
    %p125 = scmp.eq.s32.totalorder %s17, 0
    %p126 = por %p124, %p125
    %p127 = scmp.ne.s32.totalorder %s119, %s121
    %p128 = scmp.eq.s32.totalorder %s22, 1
    %p129 = por %p127, %p128
    %p130 = scmp.ne.s32.totalorder %s121, %s122
    %p131 = scmp.eq.s32.totalorder %s22, 0
    %p132 = por %p130, %p131
    %p133 = scmp.ne.s32.totalorder %s121, %s122
    %p134 = scmp.eq.s32.totalorder %s23, 1
    %p135 = por %p133, %p134
    %p137 = scmp.ne.s32.totalorder %s122, %s136
    %p138 = scmp.eq.s32.totalorder %s23, 0
    %p139 = por %p137, %p138
    %s141 = sadd.s32 %s140, 1
    %p144 = scmp.eq.s32.totalorder %s17, 1
    %p145 = scmp.ne.s32.totalorder %s140, %s142
    %p146 = scmp.eq.s32.totalorder %s17, 0
    %p147 = por %p145, %p146
    %p148 = scmp.ne.s32.totalorder %s140, %s142
    %p149 = scmp.eq.s32.totalorder %s22, 1
    %p150 = por %p148, %p149
    %p151 = scmp.ne.s32.totalorder %s142, %s143
    %p152 = scmp.eq.s32.totalorder %s22, 0
    %p153 = por %p151, %p152
    %p154 = scmp.ne.s32.totalorder %s142, %s143
    %p155 = scmp.eq.s32.totalorder %s23, 1
    %p156 = por %p154, %p155
    %p158 = scmp.ne.s32.totalorder %s143, %s157
    %p159 = scmp.eq.s32.totalorder %s23, 0
    %p160 = por %p158, %p159
    %s162 = sadd.s32 %s161, 1
    %p165 = scmp.eq.s32.totalorder %s17, 1
    %p166 = scmp.ne.s32.totalorder %s161, %s163
    %p167 = scmp.eq.s32.totalorder %s17, 0
    %p168 = por %p166, %p167
    %p169 = scmp.ne.s32.totalorder %s161, %s163
    %p170 = scmp.eq.s32.totalorder %s22, 1
    %p171 = por %p169, %p170
    %p172 = scmp.ne.s32.totalorder %s163, %s164
    %p173 = scmp.eq.s32.totalorder %s22, 0
    %p174 = por %p172, %p173
    %p175 = scmp.ne.s32.totalorder %s163, %s164
    %p176 = scmp.eq.s32.totalorder %s23, 1
    %p177 = por %p175, %p176
    %p179 = scmp.ne.s32.totalorder %s164, %s178
    %p180 = scmp.eq.s32.totalorder %s23, 0
    %p181 = por %p179, %p180
    %s183 = sadd.s32 %s182, 1
    %p186 = scmp.eq.s32.totalorder %s17, 1
    %p187 = scmp.ne.s32.totalorder %s182, %s184
    %p188 = scmp.eq.s32.totalorder %s17, 0
    %p189 = por %p187, %p188
    %p190 = scmp.ne.s32.totalorder %s182, %s184
    %p191 = scmp.eq.s32.totalorder %s22, 1
    %p192 = por %p190, %p191
    %p193 = scmp.ne.s32.totalorder %s184, %s185
    %p194 = scmp.eq.s32.totalorder %s22, 0
    %p195 = por %p193, %p194
    %p196 = scmp.ne.s32.totalorder %s184, %s185
    %p197 = scmp.eq.s32.totalorder %s23, 1
    %p198 = por %p196, %p197
    %p200 = scmp.ne.s32.totalorder %s185, %s199
    %p201 = scmp.eq.s32.totalorder %s23, 0
    %p202 = por %p200, %p201
    %s204 = sadd.s32 %s203, 1
    %p207 = scmp.eq.s32.totalorder %s17, 1
    %p208 = scmp.ne.s32.totalorder %s203, %s205
    %p209 = scmp.eq.s32.totalorder %s17, 0
    %p210 = por %p208, %p209
    %p211 = scmp.ne.s32.totalorder %s203, %s205
    %p212 = scmp.eq.s32.totalorder %s22, 1
    %p213 = por %p211, %p212
    %p214 = scmp.ne.s32.totalorder %s205, %s206
    %p215 = scmp.eq.s32.totalorder %s22, 0
    %p216 = por %p214, %p215
    %p217 = scmp.ne.s32.totalorder %s205, %s206
    %p218 = scmp.eq.s32.totalorder %s23, 1
    %p219 = por %p217, %p218
    %p221 = scmp.ne.s32.totalorder %s206, %s220
    %p222 = scmp.eq.s32.totalorder %s23, 0
    %p223 = por %p221, %p222
    %s224 = ssub.s32 %s17, %s24
    %p225 = scmp.eq.s32.totalorder %s224, 0
    %s227 = sadd.s32 %s226, 1
    %s228 = scalar_select %p225, %s226, %s227
    %p231 = pneg %p225
    %p232 = scmp.eq.s32.totalorder %s17, 1
    %p233 = por %p231, %p232
    %p234 = scmp.ne.s32.totalorder %s226, %s229
    %p235 = scmp.eq.s32.totalorder %s17, 0
    %p236 = por %p234, %p235
    %p237 = scmp.ne.s32.totalorder %s226, %s229
    %p238 = scmp.eq.s32.totalorder %s22, 1
    %p239 = por %p237, %p238
    %p240 = scmp.ne.s32.totalorder %s229, %s230
    %p241 = scmp.eq.s32.totalorder %s22, 0
    %p242 = por %p240, %p241
    %p243 = scmp.ne.s32.totalorder %s229, %s230
    %p244 = scmp.eq.s32.totalorder %s23, 1
    %p245 = por %p243, %p244
    %p247 = scmp.ne.s32.totalorder %s230, %s246
    %p248 = scmp.eq.s32.totalorder %s23, 0
    %p249 = por %p247, %p248
    %s250 = ssub.s32 %s17, %s24
    %p251 = scmp.eq.s32.totalorder %s250, 0
    %s253 = sadd.s32 %s252, 1
    %s254 = scalar_select %p251, %s252, %s253
    %p257 = pneg %p251
    %p258 = scmp.eq.s32.totalorder %s17, 1
    %p259 = por %p257, %p258
    %p260 = scmp.ne.s32.totalorder %s252, %s255
    %p261 = scmp.eq.s32.totalorder %s17, 0
    %p262 = por %p260, %p261
    %p263 = scmp.ne.s32.totalorder %s252, %s255
    %p264 = scmp.eq.s32.totalorder %s22, 1
    %p265 = por %p263, %p264
    %p266 = scmp.ne.s32.totalorder %s255, %s256
    %p267 = scmp.eq.s32.totalorder %s22, 0
    %p268 = por %p266, %p267
    %p269 = scmp.ne.s32.totalorder %s255, %s256
    %p270 = scmp.eq.s32.totalorder %s23, 1
    %p271 = por %p269, %p270
    %p273 = scmp.ne.s32.totalorder %s256, %s272
    %p274 = scmp.eq.s32.totalorder %s23, 0
    %p275 = por %p273, %p274
    %p276 = scmp.le.s32.totalorder 1, %s17
    %p277 = scmp.lt.s32.totalorder %s17, 3
    %p278 = pnand %p276, %p277
    %p279 = pneg %p278
    // Predicated region
    $region9: #{voxel_model_forward.1} parent=5 // pred_check
      _
    $region10: #{voxel_model_forward.1} parent=5 // pred_check_branch
      %281 = sbr.rel (%p278) target = $region12
    $region11: #{voxel_model_forward.1} parent=5 // pred_region
      %s282 = ssub.s32 %s17, 1
      // Predicated region
      $region13: #{voxel_model_forward.1} parent=11 // pred_check
        %p283 = pneg %p38
      $region14: #{voxel_model_forward.1} parent=11 // pred_check_branch
        %285 = sbr.rel (%p283) target = $region16
      $region15: #{voxel_model_forward.1} parent=11 // pred_region
        _
      $region16: #{voxel_model_forward.1} parent=11 // pred_fallthru
        _
      // Predicated region
      $region17: #{voxel_model_forward.1} parent=11 // pred_check
        %p286 = pneg %p111
      $region18: #{voxel_model_forward.1} parent=11 // pred_check_branch
        %288 = sbr.rel (%p286) target = $region20
      $region19: #{voxel_model_forward.1} parent=11 // pred_region
        _
      $region20: #{voxel_model_forward.1} parent=11 // pred_fallthru
        _
      // Predicated region
      $region21: #{voxel_model_forward.1} parent=11 // pred_check
        %p289 = pneg %p132
      $region22: #{voxel_model_forward.1} parent=11 // pred_check_branch
        %291 = sbr.rel (%p289) target = $region24
      $region23: #{voxel_model_forward.1} parent=11 // pred_region
        _
      $region24: #{voxel_model_forward.1} parent=11 // pred_fallthru
        _
      // Predicated region
      $region25: #{voxel_model_forward.1} parent=11 // pred_check
        %p292 = pneg %p153
      $region26: #{voxel_model_forward.1} parent=11 // pred_check_branch
        %294 = sbr.rel (%p292) target = $region28
      $region27: #{voxel_model_forward.1} parent=11 // pred_region
        _
      $region28: #{voxel_model_forward.1} parent=11 // pred_fallthru
        _
      // Predicated region
      $region29: #{voxel_model_forward.1} parent=11 // pred_check
        %p295 = pneg %p174
      $region30: #{voxel_model_forward.1} parent=11 // pred_check_branch
        %297 = sbr.rel (%p295) target = $region32
      $region31: #{voxel_model_forward.1} parent=11 // pred_region
        _
      $region32: #{voxel_model_forward.1} parent=11 // pred_fallthru
        _
      // Predicated region
      $region33: #{voxel_model_forward.1} parent=11 // pred_check
        %p298 = pneg %p195
      $region34: #{voxel_model_forward.1} parent=11 // pred_check_branch
        %300 = sbr.rel (%p298) target = $region36
      $region35: #{voxel_model_forward.1} parent=11 // pred_region
        _
      $region36: #{voxel_model_forward.1} parent=11 // pred_fallthru
        _
      // Predicated region
      $region37: #{voxel_model_forward.1} parent=11 // pred_check
        %p301 = pneg %p216
      $region38: #{voxel_model_forward.1} parent=11 // pred_check_branch
        %303 = sbr.rel (%p301) target = $region40
      $region39: #{voxel_model_forward.1} parent=11 // pred_region
        _
      $region40: #{voxel_model_forward.1} parent=11 // pred_fallthru
        _
    $region12: #{voxel_model_forward.1} parent=5 // pred_fallthru
      _
    %p304 = scmp.lt.s32.totalorder %s17, 2
    // Predicated region
    $region41: #{voxel_model_forward.1} parent=5 // pred_check
      %p305 = pneg %p304
    $region42: #{voxel_model_forward.1} parent=5 // pred_check_branch
      %307 = sbr.rel (%p305) target = $region44
    $region43: #{voxel_model_forward.1} parent=5 // pred_region
      // Predicated region
      $region45: #{voxel_model_forward.1} parent=43 // pred_check
        %p308 = pneg %p58
      $region46: #{voxel_model_forward.1} parent=43 // pred_check_branch
        %310 = sbr.rel (%p308) target = $region48
      $region47: #{voxel_model_forward.1} parent=43 // pred_region
        %p311 = scmp.lt.s32.totalorder %s17, 1
        %s312 = scalar_select %p311, %s17, 1
        %s313 = smul.addr %s312, 2
        %s314 = smul.addr %s313, 8
        %s315 = scalar_lea.vmem %s1, %s314
      $region48: #{voxel_model_forward.1} parent=43 // pred_fallthru
        _
      // Predicated region
      $region49: #{voxel_model_forward.1} parent=43 // pred_check
        %p316 = pneg %p84
      $region50: #{voxel_model_forward.1} parent=43 // pred_check_branch
        %318 = sbr.rel (%p316) target = $region52
      $region51: #{voxel_model_forward.1} parent=43 // pred_region
        %p319 = scmp.lt.s32.totalorder %s17, 1
        %s320 = scalar_select %p319, %s17, 1
        %s321 = smul.addr %s320, 2
        %s322 = smul.addr %s321, 8
        %s323 = scalar_lea.vmem %s2, %s322
      $region52: #{voxel_model_forward.1} parent=43 // pred_fallthru
        _
    $region44: #{voxel_model_forward.1} parent=5 // pred_fallthru
      _
    %p324 = scmp.le.s32.totalorder 1, %s17
    %p325 = scmp.lt.s32.totalorder %s17, 3
    %p326 = pnand %p324, %p325
    %p327 = pneg %p326
    // Predicated region
    $region53: #{voxel_model_forward.1} parent=5 // pred_check
      _
    $region54: #{voxel_model_forward.1} parent=5 // pred_check_branch
      %329 = sbr.rel (%p326) target = $region56
    $region55: #{voxel_model_forward.1} parent=5 // pred_region
      %s330 = ssub.s32 %s17, 1
      %p331 = pneg %p38
      %p332 = pneg %p35
      %p333 = scmp.lt.s32.totalorder %s22, 1
      %s334 = scalar_select %p333, %s22, 1
      %s335 = smul.addr %s334, 2
      %s336 = smul.addr %s335, 8
      %s337 = scalar_lea.vmem %s1, %s336
      %p338 = pneg %p64
      %p339 = pneg %p61
      %p340 = scmp.lt.s32.totalorder %s22, 1
      %s341 = scalar_select %p340, %s22, 1
      %s342 = smul.addr %s341, 2
      %s343 = smul.addr %s342, 8
      %s344 = scalar_lea.vmem %s2, %s343
      %p345 = pneg %p90
      %p346 = pneg %p87
      %p347 = pneg %p111
      %p348 = pneg %p108
      %p349 = pneg %p132
      %p350 = pneg %p129
      %p351 = pneg %p153
      %p352 = pneg %p150
      %p353 = pneg %p174
      %p354 = pneg %p171
      %p355 = pneg %p195
      %p356 = pneg %p192
      %p357 = pneg %p216
      %p358 = pneg %p213
      %p359 = pneg %p242
      %p360 = pneg %p239
      %p361 = scmp.lt.s32.totalorder %s22, 1
      %s362 = scalar_select %p361, %s22, 1
      %s363 = smul.addr %s362, 2
      %s364 = scalar_lea.vmem %s9, %s363
      %p365 = pneg %p268
      %p366 = pneg %p265
      %p367 = scmp.lt.s32.totalorder %s22, 1
      %s368 = scalar_select %p367, %s22, 1
      %s369 = smul.addr %s368, 2
      %s370 = smul.addr %s369, 8
      %s371 = scalar_lea.vmem %s10, %s370
      %p372 = scmp.lt.s32.totalorder %s22, 1
      %s373 = scalar_select %p372, %s22, 1
      %s374 = smul.addr %s373, 2
      %s375 = smul.addr %s374, 8
      %s376 = scalar_lea.vmem %s1, %s375
      %p377 = scmp.lt.s32.totalorder %s22, 1
      %s378 = scalar_select %p377, %s22, 1
      %s379 = smul.addr %s378, 2
      %s380 = smul.addr %s379, 8
      %s381 = scalar_lea.vmem %s2, %s380
      %p382 = scmp.lt.s32.totalorder %s22, 1
      %s383 = scalar_select %p382, %s22, 1
      %s384 = smul.addr %s383, 2
      %s385 = scalar_lea.vmem %s9, %s384
      %p386 = scmp.lt.s32.totalorder %s22, 1
      %s387 = scalar_select %p386, %s22, 1
      %s388 = smul.addr %s387, 2
      %s389 = smul.addr %s388, 8
      %s390 = scalar_lea.vmem %s10, %s389
      %v391 = vld [vmem:[%s0] ss:$2 sm:$0x3]
      %s392 = scalar_lea.vmem %s0, 1
      %v393 = vld [vmem:[%s392] ss:$2 sm:$0x3]
      %v394 = vadd.f32 %v391, -1.0
      %vm395 = vcmp.ge.f32.partialorder %v394, 0.0
      %vm396 = vcmp.le.f32.partialorder %v394, 15.0
      %vm397 = vmand %vm395, %vm396
      %v398 = vadd.f32 %v393, -1.0
      %vm399 = vcmp.ge.f32.partialorder %v398, 0.0
      %vm400 = vmand %vm397, %vm399
      %vm401 = vcmp.le.f32.partialorder %v398, 15.0
      %vm402 = vmand %vm400, %vm401
      %v403 = vsel %vm402, 1, 0
      %v404 = vcvt.s32.f32 %v403
      %v405 = vadd.f32 %v393, 0.0
      %vm406 = vcmp.ge.f32.partialorder %v405, 0.0
      %vm407 = vmand %vm397, %vm406
      %vm408 = vcmp.le.f32.partialorder %v405, 15.0
      %vm409 = vmand %vm407, %vm408
      %v410 = vsel %vm409, 1, 0
      %v411 = vcvt.s32.f32 %v410
      %v412 = vadd.f32 %v393, 1.0
      %vm413 = vcmp.ge.f32.partialorder %v412, 0.0
      %vm414 = vmand %vm397, %vm413
      %vm415 = vcmp.le.f32.partialorder %v412, 15.0
      %vm416 = vmand %vm414, %vm415
      %v417 = vsel %vm416, 1, 0
      %v418 = vcvt.s32.f32 %v417
      %v419 = vadd.f32 %v391, 0.0
      %vm420 = vcmp.ge.f32.partialorder %v419, 0.0
      %vm421 = vcmp.le.f32.partialorder %v419, 15.0
      %vm422 = vmand %vm420, %vm421
      %vm423 = vmand %vm422, %vm399
      %vm424 = vmand %vm423, %vm401
      %v425 = vsel %vm424, 1, 0
      %v426 = vcvt.s32.f32 %v425
      %vm427 = vmand %vm422, %vm413
      %vm428 = vmand %vm427, %vm415
      %v429 = vsel %vm428, 1, 0
      %v430 = vcvt.s32.f32 %v429
      %v431 = vadd.f32 %v391, 1.0
      %vm432 = vcmp.ge.f32.partialorder %v431, 0.0
      %vm433 = vcmp.le.f32.partialorder %v431, 15.0
      %vm434 = vmand %vm432, %vm433
      %vm435 = vmand %vm434, %vm399
      %vm436 = vmand %vm435, %vm401
      %v437 = vsel %vm436, 1, 0
      %v438 = vcvt.s32.f32 %v437
      %vm439 = vmand %vm434, %vm406
      %vm440 = vmand %vm439, %vm408
      %v441 = vsel %vm440, 1, 0
      %v442 = vcvt.s32.f32 %v441
      %vm443 = vmand %vm434, %vm413
      %vm444 = vmand %vm443, %vm415
      %v445 = vsel %vm444, 1, 0
      %v446 = vcvt.s32.f32 %v445
      %v447 = vld [vmem:[%s376] sm:$0xff]
      %v448 = vld [vmem:[%s376 + $0x8] sm:$0xff]
      %449 = vrot.lane.b32.xlu0 %v447, 17
      %v450 = vpop.permute.xlu0 %449
      %451 = vrot.lane.b32.xlu0 %v448, 17
      %v452 = vpop.permute.xlu0 %451
      %v453 = vlaneseq
      %v454 = vand.u32 %v453, 127
      %vm455 = vcmp.lt.s32.totalorder %v454, 17
      %v456 = vsel %vm455, %v450, %v452
      %v457 = vsel %vm455, %v452, %v450
      %v459 = vlaneseq
      %v460 = vshrl.u32 %v459, 7
      %v461 = vsub.s32 0, %v460
      %v462 = vrot.slane %v404, %v461
      %v463 = vlaneseq
      %v464 = vshrl.u32 %v463, 7
      %v465 = vsub.s32 1, %v464
      %v466 = vrot.slane %v404, %v465
      %v469 = vmul.f32 %v457, %v462
      %v470 = vmul.f32 %v456, %v466
      %471 = vrot.lane.b32.xlu0 %v447, 16
      %v472 = vpop.permute.xlu0 %471
      %473 = vrot.lane.b32.xlu0 %v448, 16
      %v474 = vpop.permute.xlu0 %473
      %vm475 = vcmp.lt.s32.totalorder %v454, 16
      %v476 = vsel %vm475, %v472, %v474
      %v477 = vsel %vm475, %v474, %v472
      %v479 = vlaneseq
      %v480 = vshrl.u32 %v479, 7
      %v481 = vsub.s32 0, %v480
      %v482 = vrot.slane %v411, %v481
      %v483 = vlaneseq
      %v484 = vshrl.u32 %v483, 7
      %v485 = vsub.s32 1, %v484
      %v486 = vrot.slane %v411, %v485
      %v489 = vmul.f32 %v477, %v482
      %v490 = vmul.f32 %v476, %v486
      %491 = vrot.lane.b32.xlu0 %v447, 15
      %v492 = vpop.permute.xlu0 %491
      %493 = vrot.lane.b32.xlu0 %v448, 15
      %v494 = vpop.permute.xlu0 %493
      %vm495 = vcmp.lt.s32.totalorder %v454, 15
      %v496 = vsel %vm495, %v492, %v494
      %v497 = vsel %vm495, %v494, %v492
      %v499 = vlaneseq
      %v500 = vshrl.u32 %v499, 7
      %v501 = vsub.s32 0, %v500
      %v502 = vrot.slane %v418, %v501
      %v503 = vlaneseq
      %v504 = vshrl.u32 %v503, 7
      %v505 = vsub.s32 1, %v504
      %v506 = vrot.slane %v418, %v505
      %v509 = vmul.f32 %v497, %v502
      %v510 = vmul.f32 %v496, %v506
      %511 = vrot.lane.b32.xlu0 %v447, 1
      %v512 = vpop.permute.xlu0 %511
      %513 = vrot.lane.b32.xlu0 %v448, 1
      %v514 = vpop.permute.xlu0 %513
      %vm515 = vcmp.lt.s32.totalorder %v454, 1
      %v516 = vsel %vm515, %v512, %v514
      %v517 = vsel %vm515, %v514, %v512
      %v519 = vlaneseq
      %v520 = vshrl.u32 %v519, 7
      %v521 = vsub.s32 0, %v520
      %v522 = vrot.slane %v426, %v521
      %v523 = vlaneseq
      %v524 = vshrl.u32 %v523, 7
      %v525 = vsub.s32 1, %v524
      %v526 = vrot.slane %v426, %v525
      %v529 = vmul.f32 %v517, %v522
      %v530 = vmul.f32 %v516, %v526
      %531 = vrot.lane.b32.xlu0 %v447, 127
      %v532 = vpop.permute.xlu0 %531
      %533 = vrot.lane.b32.xlu0 %v448, 127
      %v534 = vpop.permute.xlu0 %533
      %vm535 = vcmp.lt.s32.totalorder %v454, 127
      %v536 = vsel %vm535, %v532, %v534
      %v537 = vsel %vm535, %v534, %v532
      %v539 = vlaneseq
      %v540 = vshrl.u32 %v539, 7
      %v541 = vsub.s32 0, %v540
      %v542 = vrot.slane %v430, %v541
      %v543 = vlaneseq
      %v544 = vshrl.u32 %v543, 7
      %v545 = vsub.s32 1, %v544
      %v546 = vrot.slane %v430, %v545
      %v549 = vmul.f32 %v536, %v542
      %v550 = vmul.f32 %v537, %v546
      %551 = vrot.lane.b32.xlu0 %v447, 113
      %v552 = vpop.permute.xlu0 %551
      %553 = vrot.lane.b32.xlu0 %v448, 113
      %v554 = vpop.permute.xlu0 %553
      %vm555 = vcmp.lt.s32.totalorder %v454, 113
      %v556 = vsel %vm555, %v552, %v554
      %v557 = vsel %vm555, %v554, %v552
      %v559 = vlaneseq
      %v560 = vshrl.u32 %v559, 7
      %v561 = vsub.s32 0, %v560
      %v562 = vrot.slane %v438, %v561
      %v563 = vlaneseq
      %v564 = vshrl.u32 %v563, 7
      %v565 = vsub.s32 1, %v564
      %v566 = vrot.slane %v438, %v565
      %v569 = vmul.f32 %v556, %v562
      %v570 = vmul.f32 %v557, %v566
      %571 = vrot.lane.b32.xlu0 %v447, 112
      %v572 = vpop.permute.xlu0 %571
      %573 = vrot.lane.b32.xlu0 %v448, 112
      %v574 = vpop.permute.xlu0 %573
      %vm575 = vcmp.lt.s32.totalorder %v454, 112
      %v576 = vsel %vm575, %v572, %v574
      %v577 = vsel %vm575, %v574, %v572
      %v579 = vlaneseq
      %v580 = vshrl.u32 %v579, 7
      %v581 = vsub.s32 0, %v580
      %v582 = vrot.slane %v442, %v581
      %v583 = vlaneseq
      %v584 = vshrl.u32 %v583, 7
      %v585 = vsub.s32 1, %v584
      %v586 = vrot.slane %v442, %v585
      %v589 = vmul.f32 %v576, %v582
      %v590 = vmul.f32 %v577, %v586
      %591 = vrot.lane.b32.xlu0 %v447, 111
      %v592 = vpop.permute.xlu0 %591
      %593 = vrot.lane.b32.xlu0 %v448, 111
      %v594 = vpop.permute.xlu0 %593
      %vm595 = vcmp.lt.s32.totalorder %v454, 111
      %v596 = vsel %vm595, %v592, %v594
      %v597 = vsel %vm595, %v594, %v592
      %v599 = vlaneseq
      %v600 = vshrl.u32 %v599, 7
      %v601 = vsub.s32 0, %v600
      %v602 = vrot.slane %v446, %v601
      %v603 = vlaneseq
      %v604 = vshrl.u32 %v603, 7
      %v605 = vsub.s32 1, %v604
      %v606 = vrot.slane %v446, %v605
      %v609 = vmul.f32 %v596, %v602
      %v610 = vmul.f32 %v597, %v606
      %v611 = vld [vmem:[%s3] sm:$0xff]
      %v612 = vld [vmem:[%s3 + $0x8] sm:$0xff]
      %v613 = vld [vmem:[%s4] sm:$0xff]
      %v614 = vld [vmem:[%s4 + $0x8] sm:$0xff]
      %616 = vset.pattern.permute.xlu0 0
      %617 = vperm.xlu0 %616, %v613
      %v618 = vpop.permute.xlu0 %617
      %621 = vset.pattern.permute.xlu0 0
      %622 = vperm.xlu0 %621, %v614
      %v623 = vpop.permute.xlu0 %622
      %vm625 = vcmask 588800
      %v627 = vsel %vm625, %v611, 0
      %v630 = vsel %vm625, %v612, 0
      %632 = vmatprep.subr.mxu0 %v470
      %633 = vmatpush1.msra.mxu0 %v469
      %634 = vmatprep.subr.mxu0 %v490
      %635 = vmatpush1.msra.mxu0 %v489
      %636 = vmatprep.subr.mxu0 %v510
      %637 = vmatpush1.msra.mxu0 %v509
      %638 = vmatprep.subr.mxu0 %v530
      %639 = vmatpush1.msra.mxu0 %v529
      %640 = vmatprep.subr.mxu0 %v448
      %641 = vmatpush1.msra.mxu0 %v447
      %642 = vmatprep.subr.mxu0 %v550
      %643 = vmatpush1.msra.mxu0 %v549
      %644 = vmatprep.subr.mxu0 %v570
      %645 = vmatpush1.msra.mxu0 %v569
      %646 = vmatprep.subr.mxu0 %v590
      %647 = vmatpush1.msra.mxu0 %v589
      %648 = vmatprep.subr.mxu0 %v610
      %649 = vmatpush1.msra.mxu0 %v609
      %650 = vmatprep.subr.mxu0 0.0
      %651 = vmatpush1.msra.mxu0 0.0
      %652 = vmatprep.subr.mxu0 0.0
      %653 = vmatpush1.msra.mxu0 0.0
      %654 = vmatprep.subr.mxu0 0.0
      %655 = vmatpush1.msra.mxu0 0.0
      %656 = vmatprep.subr.mxu0 0.0
      %657 = vmatpush1.msra.mxu0 0.0
      %658 = vmatprep.subr.mxu0 0.0
      %659 = vmatpush1.msra.mxu0 0.0
      %660 = vmatprep.subr.mxu0 0.0
      %661 = vmatpush1.msra.mxu0 0.0
      %662 = vmatprep.subr.mxu0 0.0
      %663 = vmatpush1.msra.mxu0 0.0
      %664 = vmatprep.subr.mxu0 0.0
      %665 = vmatpush1.msra.mxu0 0.0
      %666 = vmatprep.subr.mxu0 0.0
      %667 = vmatpush1.msra.mxu0 0.0
      %668 = vmatprep.subr.mxu0 0.0
      %669 = vmatpush1.msra.mxu0 0.0
      %670 = vmatprep.subr.mxu0 0.0
      %671 = vmatpush1.msra.mxu0 0.0
      %672 = vmatprep.subr.mxu0 0.0
      %673 = vmatpush1.msra.mxu0 0.0
      %674 = vmatprep.subr.mxu0 0.0
      %675 = vmatpush1.msra.mxu0 0.0
      %676 = vmatprep.subr.mxu0 0.0
      %677 = vmatpush1.msra.mxu0 0.0
      %678 = vmatprep.subr.mxu0 0.0
      %679 = vmatpush1.msra.mxu0 0.0
      %680 = vmatprep.subr.mxu0 0.0
      %681 = vmatpush1.msra.mxu0 0.0
      %682 = vmatprep.subr.mxu0 0.0
      %683 = vmatpush1.msra.mxu0 0.0
      %684 = vmatprep.subr.mxu0 0.0
      %685 = vmatpush1.msra.mxu0 0.0
      %686 = vmatprep.subr.mxu0 0.0
      %687 = vmatpush1.msra.mxu0 0.0
      %688 = vmatprep.subr.mxu0 0.0
      %689 = vmatpush1.msra.mxu0 0.0
      %690 = vmatprep.subr.mxu0 0.0
      %691 = vmatpush1.msra.mxu0 0.0
      %692 = vmatprep.subr.mxu0 0.0
      %693 = vmatpush1.msra.mxu0 0.0
      %694 = vmatprep.subr.mxu0 0.0
      %695 = vmatpush1.msra.mxu0 0.0
      %696 = vmatprep.mubr.f32.mxu0 0.0
      %697 = vmatmul.mubr.f32.gmra.mrb[0].mxu0 %v627
      %v698 = vpop.f32.mrb[0].mxu0
      %v699 = vadd.f32 %v618, %v698
      %v700 = vpop.f32.mrb[0].mxu0
      %v701 = vadd.f32 %v618, %v700
      %702 = vmatprep.mubr.f32.mxu0 0.0
      %703 = vmatmul.mubr.f32.gmra.mrb[0].mxu0 %v630
      %v704 = vpop.f32.mrb[0].mxu0
      %v705 = vadd.f32 %v623, %v704
      %v706 = vpop.f32.mrb[0].mxu0
      %v707 = vadd.f32 %v623, %v706
      %708 = vdwg.mxu0
      %vm709 = vcmp.ge.f32.partialorder %v699, 0.0
      %vm710 = vcmp.ge.f32.partialorder %v701, 0.0
      %vm711 = vcmp.ge.f32.partialorder %v705, 0.0
      %vm712 = vcmp.ge.f32.partialorder %v707, 0.0
      %v713 = vmul.f32 %v699, 0.2
      %v714 = vmul.f32 %v701, 0.2
      %v715 = vmul.f32 %v705, 0.2
      %v716 = vmul.f32 %v707, 0.2
      %v717 = vsel %vm709, %v699, %v713
      %v718 = vsel %vm710, %v701, %v714
      %v719 = vsel %vm711, %v705, %v715
      %v720 = vsel %vm712, %v707, %v716
      %721 = vrot.lane.b32.xlu0 %v717, 17
      %v722 = vpop.permute.xlu0 %721
      %723 = vrot.lane.b32.xlu0 %v719, 17
      %v724 = vpop.permute.xlu0 %723
      %725 = vrot.lane.b32.xlu0 %v718, 17
      %v726 = vpop.permute.xlu0 %725
      %727 = vrot.lane.b32.xlu0 %v720, 17
      %v728 = vpop.permute.xlu0 %727
      %v729 = vsel %vm455, %v722, %v726
      %v730 = vsel %vm455, %v724, %v728
      %v731 = vsel %vm455, %v726, %v722
      %v732 = vsel %vm455, %v728, %v724
      %v733 = vmul.f32 %v731, %v462
      %v734 = vmul.f32 %v729, %v466
      %v735 = vmul.f32 %v732, %v462
      %v736 = vmul.f32 %v730, %v466
      %737 = vrot.lane.b32.xlu0 %v717, 16
      %v738 = vpop.permute.xlu0 %737
      %739 = vrot.lane.b32.xlu0 %v719, 16
      %v740 = vpop.permute.xlu0 %739
      %741 = vrot.lane.b32.xlu0 %v718, 16
      %v742 = vpop.permute.xlu0 %741
      %743 = vrot.lane.b32.xlu0 %v720, 16
      %v744 = vpop.permute.xlu0 %743
      %v745 = vsel %vm475, %v738, %v742
      %v746 = vsel %vm475, %v740, %v744
      %v747 = vsel %vm475, %v742, %v738
      %v748 = vsel %vm475, %v744, %v740
      %v749 = vmul.f32 %v747, %v482
      %v750 = vmul.f32 %v745, %v486
      %v751 = vmul.f32 %v748, %v482
      %v752 = vmul.f32 %v746, %v486
      %753 = vrot.lane.b32.xlu0 %v717, 15
      %v754 = vpop.permute.xlu0 %753
      %755 = vrot.lane.b32.xlu0 %v719, 15
      %v756 = vpop.permute.xlu0 %755
      %757 = vrot.lane.b32.xlu0 %v718, 15
      %v758 = vpop.permute.xlu0 %757
      %759 = vrot.lane.b32.xlu0 %v720, 15
      %v760 = vpop.permute.xlu0 %759
      %v761 = vsel %vm495, %v754, %v758
      %v762 = vsel %vm495, %v756, %v760
      %v763 = vsel %vm495, %v758, %v754
      %v764 = vsel %vm495, %v760, %v756
      %v765 = vmul.f32 %v763, %v502
      %v766 = vmul.f32 %v761, %v506
      %v767 = vmul.f32 %v764, %v502
      %v768 = vmul.f32 %v762, %v506
      %769 = vrot.lane.b32.xlu0 %v717, 1
      %v770 = vpop.permute.xlu0 %769
      %771 = vrot.lane.b32.xlu0 %v719, 1
      %v772 = vpop.permute.xlu0 %771
      %773 = vrot.lane.b32.xlu0 %v718, 1
      %v774 = vpop.permute.xlu0 %773
      %775 = vrot.lane.b32.xlu0 %v720, 1
      %v776 = vpop.permute.xlu0 %775
      %v777 = vsel %vm515, %v770, %v774
      %v778 = vsel %vm515, %v772, %v776
      %v779 = vsel %vm515, %v774, %v770
      %v780 = vsel %vm515, %v776, %v772
      %v781 = vmul.f32 %v779, %v522
      %v782 = vmul.f32 %v777, %v526
      %v783 = vmul.f32 %v780, %v522
      %v784 = vmul.f32 %v778, %v526
      %785 = vrot.lane.b32.xlu0 %v717, 127
      %v786 = vpop.permute.xlu0 %785
      %787 = vrot.lane.b32.xlu0 %v719, 127
      %v788 = vpop.permute.xlu0 %787
      %789 = vrot.lane.b32.xlu0 %v718, 127
      %v790 = vpop.permute.xlu0 %789
      %791 = vrot.lane.b32.xlu0 %v720, 127
      %v792 = vpop.permute.xlu0 %791
      %v793 = vsel %vm535, %v786, %v790
      %v794 = vsel %vm535, %v788, %v792
      %v795 = vsel %vm535, %v790, %v786
      %v796 = vsel %vm535, %v792, %v788
      %v797 = vmul.f32 %v793, %v542
      %v798 = vmul.f32 %v795, %v546
      %v799 = vmul.f32 %v794, %v542
      %v800 = vmul.f32 %v796, %v546
      %801 = vrot.lane.b32.xlu0 %v717, 113
      %v802 = vpop.permute.xlu0 %801
      %803 = vrot.lane.b32.xlu0 %v719, 113
      %v804 = vpop.permute.xlu0 %803
      %805 = vrot.lane.b32.xlu0 %v718, 113
      %v806 = vpop.permute.xlu0 %805
      %807 = vrot.lane.b32.xlu0 %v720, 113
      %v808 = vpop.permute.xlu0 %807
      %v809 = vsel %vm555, %v802, %v806
      %v810 = vsel %vm555, %v804, %v808
      %v811 = vsel %vm555, %v806, %v802
      %v812 = vsel %vm555, %v808, %v804
      %v813 = vmul.f32 %v809, %v562
      %v814 = vmul.f32 %v811, %v566
      %v815 = vmul.f32 %v810, %v562
      %v816 = vmul.f32 %v812, %v566
      %817 = vrot.lane.b32.xlu0 %v717, 112
      %v818 = vpop.permute.xlu0 %817
      %819 = vrot.lane.b32.xlu0 %v719, 112
      %v820 = vpop.permute.xlu0 %819
      %821 = vrot.lane.b32.xlu0 %v718, 112
      %v822 = vpop.permute.xlu0 %821
      %823 = vrot.lane.b32.xlu0 %v720, 112
      %v824 = vpop.permute.xlu0 %823
      %v825 = vsel %vm575, %v818, %v822
      %v826 = vsel %vm575, %v820, %v824
      %v827 = vsel %vm575, %v822, %v818
      %v828 = vsel %vm575, %v824, %v820
      %v829 = vmul.f32 %v825, %v582
      %v830 = vmul.f32 %v827, %v586
      %v831 = vmul.f32 %v826, %v582
      %v832 = vmul.f32 %v828, %v586
      %833 = vrot.lane.b32.xlu0 %v717, 111
      %v834 = vpop.permute.xlu0 %833
      %835 = vrot.lane.b32.xlu0 %v719, 111
      %v836 = vpop.permute.xlu0 %835
      %837 = vrot.lane.b32.xlu0 %v718, 111
      %v838 = vpop.permute.xlu0 %837
      %839 = vrot.lane.b32.xlu0 %v720, 111
      %v840 = vpop.permute.xlu0 %839
      %v841 = vsel %vm595, %v834, %v838
      %v842 = vsel %vm595, %v836, %v840
      %v843 = vsel %vm595, %v838, %v834
      %v844 = vsel %vm595, %v840, %v836
      %v845 = vmul.f32 %v841, %v602
      %v846 = vmul.f32 %v843, %v606
      %v847 = vmul.f32 %v842, %v602
      %v848 = vmul.f32 %v844, %v606
      %v849 = vld [vmem:[%s5] sm:$0xff]
      %v850 = vld [vmem:[%s5 + $0x8] sm:$0xff]
      %v851 = vld [vmem:[%s5 + $0x10] sm:$0xff]
      %v852 = vld [vmem:[%s5 + $0x18] sm:$0xff]
      %v853 = vld [vmem:[%s6] sm:$0xff]
      %v854 = vld [vmem:[%s6 + $0x8] sm:$0xff]
      %856 = vset.pattern.permute.xlu0 0
      %857 = vperm.xlu0 %856, %v853
      %v858 = vpop.permute.xlu0 %857
      %861 = vset.pattern.permute.xlu0 0
      %862 = vperm.xlu0 %861, %v854
      %v863 = vpop.permute.xlu0 %862
      %vm865 = vcmask 130048
      %v867 = vsel %vm865, %v850, 0
      %v870 = vsel %vm865, %v852, 0
      %872 = vmatprep.subr.mxu0 %v734
      %873 = vmatpush1.msra.mxu0 %v733
      %874 = vmatprep.subr.mxu0 %v736
      %875 = vmatpush1.msra.mxu0 %v735
      %876 = vmatprep.subr.mxu0 %v750
      %877 = vmatpush1.msra.mxu0 %v749
      %878 = vmatprep.subr.mxu0 %v752
      %879 = vmatpush1.msra.mxu0 %v751
      %880 = vmatprep.subr.mxu0 %v766
      %881 = vmatpush1.msra.mxu0 %v765
      %882 = vmatprep.subr.mxu0 %v768
      %883 = vmatpush1.msra.mxu0 %v767
      %884 = vmatprep.subr.mxu0 %v782
      %885 = vmatpush1.msra.mxu0 %v781
      %886 = vmatprep.subr.mxu0 %v784
      %887 = vmatpush1.msra.mxu0 %v783
      %888 = vmatprep.subr.mxu0 %v718
      %889 = vmatpush1.msra.mxu0 %v717
      %890 = vmatprep.subr.mxu0 %v720
      %891 = vmatpush1.msra.mxu0 %v719
      %892 = vmatprep.subr.mxu0 %v798
      %893 = vmatpush1.msra.mxu0 %v797
      %894 = vmatprep.subr.mxu0 %v800
      %895 = vmatpush1.msra.mxu0 %v799
      %896 = vmatprep.subr.mxu0 %v814
      %897 = vmatpush1.msra.mxu0 %v813
      %898 = vmatprep.subr.mxu0 %v816
      %899 = vmatpush1.msra.mxu0 %v815
      %900 = vmatprep.subr.mxu0 %v830
      %901 = vmatpush1.msra.mxu0 %v829
      %902 = vmatprep.subr.mxu0 %v832
      %903 = vmatpush1.msra.mxu0 %v831
      %904 = vmatprep.subr.mxu0 %v846
      %905 = vmatpush1.msra.mxu0 %v845
      %906 = vmatprep.subr.mxu0 %v848
      %907 = vmatpush1.msra.mxu0 %v847
      %908 = vmatprep.subr.mxu0 0.0
      %909 = vmatpush1.msra.mxu0 0.0
      %910 = vmatprep.subr.mxu0 0.0
      %911 = vmatpush1.msra.mxu0 0.0
      %912 = vmatprep.subr.mxu0 0.0
      %913 = vmatpush1.msra.mxu0 0.0
      %914 = vmatprep.subr.mxu0 0.0
      %915 = vmatpush1.msra.mxu0 0.0
      %916 = vmatprep.subr.mxu0 0.0
      %917 = vmatpush1.msra.mxu0 0.0
      %918 = vmatprep.subr.mxu0 0.0
      %919 = vmatpush1.msra.mxu0 0.0
      %920 = vmatprep.subr.mxu0 0.0
      %921 = vmatpush1.msra.mxu0 0.0
      %922 = vmatprep.subr.mxu0 0.0
      %923 = vmatpush1.msra.mxu0 0.0
      %924 = vmatprep.subr.mxu0 0.0
      %925 = vmatpush1.msra.mxu0 0.0
      %926 = vmatprep.subr.mxu0 0.0
      %927 = vmatpush1.msra.mxu0 0.0
      %928 = vmatprep.subr.mxu0 0.0
      %929 = vmatpush1.msra.mxu0 0.0
      %930 = vmatprep.subr.mxu0 0.0
      %931 = vmatpush1.msra.mxu0 0.0
      %932 = vmatprep.subr.mxu0 0.0
      %933 = vmatpush1.msra.mxu0 0.0
      %934 = vmatprep.subr.mxu0 0.0
      %935 = vmatpush1.msra.mxu0 0.0
      %936 = vmatprep.mubr.f32.mxu0 %v867
      %937 = vmatmul.mubr.f32.gmra.mrb[0].mxu0 %v849
      %v938 = vpop.f32.mrb[0].mxu0
      %v939 = vadd.f32 %v858, %v938
      %v940 = vpop.f32.mrb[0].mxu0
      %v941 = vadd.f32 %v858, %v940
      %942 = vmatprep.mubr.f32.mxu0 %v870
      %943 = vmatmul.mubr.f32.gmra.mrb[0].mxu0 %v851
      %v944 = vpop.f32.mrb[0].mxu0
      %v945 = vadd.f32 %v863, %v944
      %v946 = vpop.f32.mrb[0].mxu0
      %v947 = vadd.f32 %v863, %v946
      %948 = vdwg.mxu0
      %vm949 = vcmp.ge.f32.partialorder %v939, 0.0
      %vm950 = vcmp.ge.f32.partialorder %v941, 0.0
      %vm951 = vcmp.ge.f32.partialorder %v945, 0.0
      %vm952 = vcmp.ge.f32.partialorder %v947, 0.0
      %v953 = vmul.f32 %v939, 0.2
      %v954 = vmul.f32 %v941, 0.2
      %v955 = vmul.f32 %v945, 0.2
      %v956 = vmul.f32 %v947, 0.2
      %v957 = vsel %vm949, %v939, %v953
      %v958 = vsel %vm950, %v941, %v954
      %v959 = vsel %vm951, %v945, %v955
      %v960 = vsel %vm952, %v947, %v956
      %961 = vrot.lane.b32.xlu0 %v957, 17
      %v962 = vpop.permute.xlu0 %961
      %963 = vrot.lane.b32.xlu0 %v959, 17
      %v964 = vpop.permute.xlu0 %963
      %965 = vrot.lane.b32.xlu0 %v958, 17
      %v966 = vpop.permute.xlu0 %965
      %967 = vrot.lane.b32.xlu0 %v960, 17
      %v968 = vpop.permute.xlu0 %967
      %v969 = vsel %vm455, %v962, %v966
      %v970 = vsel %vm455, %v964, %v968
      %v971 = vsel %vm455, %v966, %v962
      %v972 = vsel %vm455, %v968, %v964
      %v973 = vmul.f32 %v971, %v462
      %v974 = vmul.f32 %v969, %v466
      %v975 = vmul.f32 %v972, %v462
      %v976 = vmul.f32 %v970, %v466
      %977 = vrot.lane.b32.xlu0 %v957, 16
      %v978 = vpop.permute.xlu0 %977
      %979 = vrot.lane.b32.xlu0 %v959, 16
      %v980 = vpop.permute.xlu0 %979
      %981 = vrot.lane.b32.xlu0 %v958, 16
      %v982 = vpop.permute.xlu0 %981
      %983 = vrot.lane.b32.xlu0 %v960, 16
      %v984 = vpop.permute.xlu0 %983
      %v985 = vsel %vm475, %v978, %v982
      %v986 = vsel %vm475, %v980, %v984
      %v987 = vsel %vm475, %v982, %v978
      %v988 = vsel %vm475, %v984, %v980
      %v989 = vmul.f32 %v987, %v482
      %v990 = vmul.f32 %v985, %v486
      %v991 = vmul.f32 %v988, %v482
      %v992 = vmul.f32 %v986, %v486
      %993 = vrot.lane.b32.xlu0 %v957, 15
      %v994 = vpop.permute.xlu0 %993
      %995 = vrot.lane.b32.xlu0 %v959, 15
      %v996 = vpop.permute.xlu0 %995
      %997 = vrot.lane.b32.xlu0 %v958, 15
      %v998 = vpop.permute.xlu0 %997
      %999 = vrot.lane.b32.xlu0 %v960, 15
      %v1000 = vpop.permute.xlu0 %999
      %v1001 = vsel %vm495, %v994, %v998
      %v1002 = vsel %vm495, %v996, %v1000
      %v1003 = vsel %vm495, %v998, %v994
      %v1004 = vsel %vm495, %v1000, %v996
      %v1005 = vmul.f32 %v1003, %v502
      %v1006 = vmul.f32 %v1001, %v506
      %v1007 = vmul.f32 %v1004, %v502
      %v1008 = vmul.f32 %v1002, %v506
      %1009 = vrot.lane.b32.xlu0 %v957, 1
      %v1010 = vpop.permute.xlu0 %1009
      %1011 = vrot.lane.b32.xlu0 %v959, 1
      %v1012 = vpop.permute.xlu0 %1011
      %1013 = vrot.lane.b32.xlu0 %v958, 1
      %v1014 = vpop.permute.xlu0 %1013
      %1015 = vrot.lane.b32.xlu0 %v960, 1
      %v1016 = vpop.permute.xlu0 %1015
      %v1017 = vsel %vm515, %v1010, %v1014
      %v1018 = vsel %vm515, %v1012, %v1016
      %v1019 = vsel %vm515, %v1014, %v1010
      %v1020 = vsel %vm515, %v1016, %v1012
      %v1021 = vmul.f32 %v1019, %v522
      %v1022 = vmul.f32 %v1017, %v526
      %v1023 = vmul.f32 %v1020, %v522
      %v1024 = vmul.f32 %v1018, %v526
      %1025 = vrot.lane.b32.xlu0 %v957, 127
      %v1026 = vpop.permute.xlu0 %1025
      %1027 = vrot.lane.b32.xlu0 %v959, 127
      %v1028 = vpop.permute.xlu0 %1027
      %1029 = vrot.lane.b32.xlu0 %v958, 127
      %v1030 = vpop.permute.xlu0 %1029
      %1031 = vrot.lane.b32.xlu0 %v960, 127
      %v1032 = vpop.permute.xlu0 %1031
      %v1033 = vsel %vm535, %v1026, %v1030
      %v1034 = vsel %vm535, %v1028, %v1032
      %v1035 = vsel %vm535, %v1030, %v1026
      %v1036 = vsel %vm535, %v1032, %v1028
      %v1037 = vmul.f32 %v1033, %v542
      %v1038 = vmul.f32 %v1035, %v546
      %v1039 = vmul.f32 %v1034, %v542
      %v1040 = vmul.f32 %v1036, %v546
      %1041 = vrot.lane.b32.xlu0 %v957, 113
      %v1042 = vpop.permute.xlu0 %1041
      %1043 = vrot.lane.b32.xlu0 %v959, 113
      %v1044 = vpop.permute.xlu0 %1043
      %1045 = vrot.lane.b32.xlu0 %v958, 113
      %v1046 = vpop.permute.xlu0 %1045
      %1047 = vrot.lane.b32.xlu0 %v960, 113
      %v1048 = vpop.permute.xlu0 %1047
      %v1049 = vsel %vm555, %v1042, %v1046
      %v1050 = vsel %vm555, %v1044, %v1048
      %v1051 = vsel %vm555, %v1046, %v1042
      %v1052 = vsel %vm555, %v1048, %v1044
      %v1053 = vmul.f32 %v1049, %v562
      %v1054 = vmul.f32 %v1051, %v566
      %v1055 = vmul.f32 %v1050, %v562
      %v1056 = vmul.f32 %v1052, %v566
      %1057 = vrot.lane.b32.xlu0 %v957, 112
      %v1058 = vpop.permute.xlu0 %1057
      %1059 = vrot.lane.b32.xlu0 %v959, 112
      %v1060 = vpop.permute.xlu0 %1059
      %1061 = vrot.lane.b32.xlu0 %v958, 112
      %v1062 = vpop.permute.xlu0 %1061
      %1063 = vrot.lane.b32.xlu0 %v960, 112
      %v1064 = vpop.permute.xlu0 %1063
      %v1065 = vsel %vm575, %v1058, %v1062
      %v1066 = vsel %vm575, %v1060, %v1064
      %v1067 = vsel %vm575, %v1062, %v1058
      %v1068 = vsel %vm575, %v1064, %v1060
      %v1069 = vmul.f32 %v1065, %v582
      %v1070 = vmul.f32 %v1067, %v586
      %v1071 = vmul.f32 %v1066, %v582
      %v1072 = vmul.f32 %v1068, %v586
      %1073 = vrot.lane.b32.xlu0 %v957, 111
      %v1074 = vpop.permute.xlu0 %1073
      %1075 = vrot.lane.b32.xlu0 %v959, 111
      %v1076 = vpop.permute.xlu0 %1075
      %1077 = vrot.lane.b32.xlu0 %v958, 111
      %v1078 = vpop.permute.xlu0 %1077
      %1079 = vrot.lane.b32.xlu0 %v960, 111
      %v1080 = vpop.permute.xlu0 %1079
      %v1081 = vsel %vm595, %v1074, %v1078
      %v1082 = vsel %vm595, %v1076, %v1080
      %v1083 = vsel %vm595, %v1078, %v1074
      %v1084 = vsel %vm595, %v1080, %v1076
      %v1085 = vmul.f32 %v1081, %v602
      %v1086 = vmul.f32 %v1083, %v606
      %v1087 = vmul.f32 %v1082, %v602
      %v1088 = vmul.f32 %v1084, %v606
      %v1089 = vld [vmem:[%s7] sm:$0xff]
      %v1090 = vld [vmem:[%s7 + $0x8] sm:$0xff]
      %v1091 = vld [vmem:[%s8] sm:$0xff]
      %1093 = vset.pattern.permute.xlu0 0
      %1094 = vperm.xlu0 %1093, %v1091
      %v1095 = vpop.permute.xlu0 %1094
      %v1098 = vsel %vm865, %v1090, 0
      %1100 = vmatprep.subr.mxu0 %v974
      %1101 = vmatpush1.msra.mxu0 %v973
      %1102 = vmatprep.subr.mxu0 %v976
      %1103 = vmatpush1.msra.mxu0 %v975
      %1104 = vmatprep.subr.mxu0 %v990
      %1105 = vmatpush1.msra.mxu0 %v989
      %1106 = vmatprep.subr.mxu0 %v992
      %1107 = vmatpush1.msra.mxu0 %v991
      %1108 = vmatprep.subr.mxu0 %v1006
      %1109 = vmatpush1.msra.mxu0 %v1005
      %1110 = vmatprep.subr.mxu0 %v1008
      %1111 = vmatpush1.msra.mxu0 %v1007
      %1112 = vmatprep.subr.mxu0 %v1022
      %1113 = vmatpush1.msra.mxu0 %v1021
      %1114 = vmatprep.subr.mxu0 %v1024
      %1115 = vmatpush1.msra.mxu0 %v1023
      %1116 = vmatprep.subr.mxu0 %v958
      %1117 = vmatpush1.msra.mxu0 %v957
      %1118 = vmatprep.subr.mxu0 %v960
      %1119 = vmatpush1.msra.mxu0 %v959
      %1120 = vmatprep.subr.mxu0 %v1038
      %1121 = vmatpush1.msra.mxu0 %v1037
      %1122 = vmatprep.subr.mxu0 %v1040
      %1123 = vmatpush1.msra.mxu0 %v1039
      %1124 = vmatprep.subr.mxu0 %v1054
      %1125 = vmatpush1.msra.mxu0 %v1053
      %1126 = vmatprep.subr.mxu0 %v1056
      %1127 = vmatpush1.msra.mxu0 %v1055
      %1128 = vmatprep.subr.mxu0 %v1070
      %1129 = vmatpush1.msra.mxu0 %v1069
      %1130 = vmatprep.subr.mxu0 %v1072
      %1131 = vmatpush1.msra.mxu0 %v1071
      %1132 = vmatprep.subr.mxu0 %v1086
      %1133 = vmatpush1.msra.mxu0 %v1085
      %1134 = vmatprep.subr.mxu0 %v1088
      %1135 = vmatpush1.msra.mxu0 %v1087
      %1136 = vmatprep.subr.mxu0 0.0
      %1137 = vmatpush1.msra.mxu0 0.0
      %1138 = vmatprep.subr.mxu0 0.0
      %1139 = vmatpush1.msra.mxu0 0.0
      %1140 = vmatprep.subr.mxu0 0.0
      %1141 = vmatpush1.msra.mxu0 0.0
      %1142 = vmatprep.subr.mxu0 0.0
      %1143 = vmatpush1.msra.mxu0 0.0
      %1144 = vmatprep.subr.mxu0 0.0
      %1145 = vmatpush1.msra.mxu0 0.0
      %1146 = vmatprep.subr.mxu0 0.0
      %1147 = vmatpush1.msra.mxu0 0.0
      %1148 = vmatprep.subr.mxu0 0.0
      %1149 = vmatpush1.msra.mxu0 0.0
      %1150 = vmatprep.subr.mxu0 0.0
      %1151 = vmatpush1.msra.mxu0 0.0
      %1152 = vmatprep.subr.mxu0 0.0
      %1153 = vmatpush1.msra.mxu0 0.0
      %1154 = vmatprep.subr.mxu0 0.0
      %1155 = vmatpush1.msra.mxu0 0.0
      %1156 = vmatprep.subr.mxu0 0.0
      %1157 = vmatpush1.msra.mxu0 0.0
      %1158 = vmatprep.subr.mxu0 0.0
      %1159 = vmatpush1.msra.mxu0 0.0
      %1160 = vmatprep.subr.mxu0 0.0
      %1161 = vmatpush1.msra.mxu0 0.0
      %1162 = vmatprep.subr.mxu0 0.0
      %1163 = vmatpush1.msra.mxu0 0.0
      %1164 = vmatprep.mubr.f32.mxu0 %v1098
      %1165 = vmatmul.mubr.f32.gmra.mrb[0].mxu0 %v1089
      %v1166 = vpop.f32.mrb[0].mxu0
      %v1167 = vadd.f32 %v1095, %v1166
      %v1168 = vpop.f32.mrb[0].mxu0
      %v1169 = vadd.f32 %v1095, %v1168
      %1170 = vdwg.mxu0
      %v1173 = vcombine.low %v1167, %v1169
      %v1175 = vunpack.c.l.s4 1966171168
      %v1176 = vunpack.c.0.s8 %v1175
      %v1177 = vlaneseq
      %v1178 = vshrl.u32 %v1177, 7
      %v1179 = vsub.s32 %v1176, %v1178
      %v1180 = vrot.slane %v1173, %v1179
      %v1182 = vunpack.c.l.s4 1966171168
      %v1183 = vunpack.c.0.s8 %v1182
      %v1184 = vlaneseq
      %v1185 = vshrl.u32 %v1184, 7
      %v1186 = vsub.s32 %v1183, %v1185
      %v1187 = vrot.slane %v1180, %v1186
      %v1189 = vadd.f32 %v391, %v1187
      %v1190 = vcombine.high %v1180, %v1180
      %v1192 = vunpack.c.l.s4 1966171168
      %v1193 = vunpack.c.0.s8 %v1192
      %v1194 = vlaneseq
      %v1195 = vshrl.u32 %v1194, 7
      %v1196 = vsub.s32 %v1193, %v1195
      %v1197 = vrot.slane %v1190, %v1196
      %v1199 = vadd.f32 %v393, %v1197
      %v1200 = vfloor.f32 %v1189
      %v1201 = vfloor.f32 %v1199
      %v1202 = vsub.f32 %v1189, %v1200
      %v1203 = vsub.f32 %v1199, %v1201
      %v1204 = vlaneseq
      %v1205 = vshrl.u32 %v1204, 7
      %v1206 = vadd.s32 %v1205, 8
      %v1207 = vsub.f32 1.0, %v1202
      %v1208 = vadd.f32 %v1200, 1.0
      %vm1209 = vcmp.ge.f32.partialorder %v1200, 0.0
      %vm1210 = vcmp.le.f32.partialorder %v1200, 15.0
      %vm1211 = vmand %vm1209, %vm1210
      %v1212 = vsel %vm1211, 1, 0
      %v1213 = vcvt.s32.f32 %v1212
      %v1214 = vmax.f32 %v1200, 0.0
      %v1215 = vmin.f32 %v1214, 15.0
      %v1216 = vcvt.f32.s32.to.zero.pseudo %v1215
      %v1217 = vmul.f32 %v1207, %v1213
      %v1218 = vlaneseq
      %v1219 = vshrl.u32 %v1218, 7
      %v1220 = vsub.s32 0, %v1219
      %v1221 = vrot.slane %v1216, %v1220
      %v1222 = vlaneseq
      %v1223 = vshrl.u32 %v1222, 7
      %v1224 = vsub.s32 1, %v1223
      %v1225 = vrot.slane %v1216, %v1224
      %vm1226 = vcmp.eq.s32.totalorder %v1205, %v1221
      %vm1227 = vcmp.eq.s32.totalorder %v1205, %v1225
      %vm1228 = vcmp.eq.s32.totalorder %v1206, %v1221
      %vm1229 = vcmp.eq.s32.totalorder %v1206, %v1225
      %v1230 = vsel %vm1226, 1, 0
      %v1231 = vsel %vm1227, 1, 0
      %v1232 = vsel %vm1228, 1, 0
      %v1233 = vsel %vm1229, 1, 0
      %v1234 = vcvt.s32.f32 %v1230
      %v1235 = vcvt.s32.f32 %v1231
      %v1236 = vcvt.s32.f32 %v1232
      %v1237 = vcvt.s32.f32 %v1233
      %v1239 = vlaneseq
      %v1240 = vshrl.u32 %v1239, 7
      %v1241 = vsub.s32 0, %v1240
      %v1242 = vrot.slane %v1217, %v1241
      %v1243 = vlaneseq
      %v1244 = vshrl.u32 %v1243, 7
      %v1245 = vsub.s32 1, %v1244
      %v1246 = vrot.slane %v1217, %v1245
      %v1249 = vmul.f32 %v1242, %v1234
      %v1250 = vmul.f32 %v1246, %v1235
      %v1251 = vmul.f32 %v1242, %v1236
      %v1252 = vmul.f32 %v1246, %v1237
      %vm1253 = vcmp.ge.f32.partialorder %v1208, 0.0
      %vm1254 = vcmp.le.f32.partialorder %v1208, 15.0
      %vm1255 = vmand %vm1253, %vm1254
      %v1256 = vsel %vm1255, 1, 0
      %v1257 = vcvt.s32.f32 %v1256
      %v1258 = vmax.f32 %v1208, 0.0
      %v1259 = vmin.f32 %v1258, 15.0
      %v1260 = vcvt.f32.s32.to.zero.pseudo %v1259
      %v1261 = vmul.f32 %v1202, %v1257
      %v1262 = vlaneseq
      %v1263 = vshrl.u32 %v1262, 7
      %v1264 = vsub.s32 0, %v1263
      %v1265 = vrot.slane %v1260, %v1264
      %v1266 = vlaneseq
      %v1267 = vshrl.u32 %v1266, 7
      %v1268 = vsub.s32 1, %v1267
      %v1269 = vrot.slane %v1260, %v1268
      %vm1270 = vcmp.eq.s32.totalorder %v1205, %v1265
      %vm1271 = vcmp.eq.s32.totalorder %v1205, %v1269
      %vm1272 = vcmp.eq.s32.totalorder %v1206, %v1265
      %vm1273 = vcmp.eq.s32.totalorder %v1206, %v1269
      %v1274 = vsel %vm1270, 1, 0
      %v1275 = vsel %vm1271, 1, 0
      %v1276 = vsel %vm1272, 1, 0
      %v1277 = vsel %vm1273, 1, 0
      %v1278 = vcvt.s32.f32 %v1274
      %v1279 = vcvt.s32.f32 %v1275
      %v1280 = vcvt.s32.f32 %v1276
      %v1281 = vcvt.s32.f32 %v1277
      %v1283 = vlaneseq
      %v1284 = vshrl.u32 %v1283, 7
      %v1285 = vsub.s32 0, %v1284
      %v1286 = vrot.slane %v1261, %v1285
      %v1287 = vlaneseq
      %v1288 = vshrl.u32 %v1287, 7
      %v1289 = vsub.s32 1, %v1288
      %v1290 = vrot.slane %v1261, %v1289
      %v1293 = vmul.f32 %v1286, %v1278
      %v1294 = vmul.f32 %v1290, %v1279
      %v1295 = vmul.f32 %v1286, %v1280
      %v1296 = vmul.f32 %v1290, %v1281
      %v1297 = vadd.f32 %v1249, %v1293
      %v1298 = vadd.f32 %v1250, %v1294
      %v1299 = vadd.f32 %v1251, %v1295
      %v1300 = vadd.f32 %v1252, %v1296
      %v1301 = vsub.f32 1.0, %v1203
      %v1302 = vadd.f32 %v1201, 1.0
      %vm1303 = vcmp.ge.f32.partialorder %v1201, 0.0
      %vm1304 = vcmp.le.f32.partialorder %v1201, 15.0
      %vm1305 = vmand %vm1303, %vm1304
      %v1306 = vsel %vm1305, 1, 0
      %v1307 = vcvt.s32.f32 %v1306
      %v1308 = vmax.f32 %v1201, 0.0
      %v1309 = vmin.f32 %v1308, 15.0
      %v1310 = vcvt.f32.s32.to.zero.pseudo %v1309
      %v1311 = vmul.f32 %v1301, %v1307
      %v1312 = vlaneseq
      %v1313 = vshrl.u32 %v1312, 7
      %v1314 = vsub.s32 0, %v1313
      %v1315 = vrot.slane %v1310, %v1314
      %v1316 = vlaneseq
      %v1317 = vshrl.u32 %v1316, 7
      %v1318 = vsub.s32 1, %v1317
      %v1319 = vrot.slane %v1310, %v1318
      %vm1320 = vcmp.eq.s32.totalorder %v1205, %v1315
      %vm1321 = vcmp.eq.s32.totalorder %v1205, %v1319
      %vm1322 = vcmp.eq.s32.totalorder %v1206, %v1315
      %vm1323 = vcmp.eq.s32.totalorder %v1206, %v1319
      %v1324 = vsel %vm1320, 1, 0
      %v1325 = vsel %vm1321, 1, 0
      %v1326 = vsel %vm1322, 1, 0
      %v1327 = vsel %vm1323, 1, 0
      %v1328 = vcvt.s32.f32 %v1324
      %v1329 = vcvt.s32.f32 %v1325
      %v1330 = vcvt.s32.f32 %v1326
      %v1331 = vcvt.s32.f32 %v1327
      %v1333 = vlaneseq
      %v1334 = vshrl.u32 %v1333, 7
      %v1335 = vsub.s32 0, %v1334
      %v1336 = vrot.slane %v1311, %v1335
      %v1337 = vlaneseq
      %v1338 = vshrl.u32 %v1337, 7
      %v1339 = vsub.s32 1, %v1338
      %v1340 = vrot.slane %v1311, %v1339
      %v1343 = vmul.f32 %v1336, %v1328
      %v1344 = vmul.f32 %v1340, %v1329
      %v1345 = vmul.f32 %v1336, %v1330
      %v1346 = vmul.f32 %v1340, %v1331
      %vm1347 = vcmp.ge.f32.partialorder %v1302, 0.0
      %vm1348 = vcmp.le.f32.partialorder %v1302, 15.0
      %vm1349 = vmand %vm1347, %vm1348
      %v1350 = vsel %vm1349, 1, 0
      %v1351 = vcvt.s32.f32 %v1350
      %v1352 = vmax.f32 %v1302, 0.0
      %v1353 = vmin.f32 %v1352, 15.0
      %v1354 = vcvt.f32.s32.to.zero.pseudo %v1353
      %v1355 = vmul.f32 %v1203, %v1351
      %v1356 = vlaneseq
      %v1357 = vshrl.u32 %v1356, 7
      %v1358 = vsub.s32 0, %v1357
      %v1359 = vrot.slane %v1354, %v1358
      %v1360 = vlaneseq
      %v1361 = vshrl.u32 %v1360, 7
      %v1362 = vsub.s32 1, %v1361
      %v1363 = vrot.slane %v1354, %v1362
      %vm1364 = vcmp.eq.s32.totalorder %v1205, %v1359
      %vm1365 = vcmp.eq.s32.totalorder %v1205, %v1363
      %vm1366 = vcmp.eq.s32.totalorder %v1206, %v1359
      %vm1367 = vcmp.eq.s32.totalorder %v1206, %v1363
      %v1368 = vsel %vm1364, 1, 0
      %v1369 = vsel %vm1365, 1, 0
      %v1370 = vsel %vm1366, 1, 0
      %v1371 = vsel %vm1367, 1, 0
      %v1372 = vcvt.s32.f32 %v1368
      %v1373 = vcvt.s32.f32 %v1369
      %v1374 = vcvt.s32.f32 %v1370
      %v1375 = vcvt.s32.f32 %v1371
      %v1377 = vlaneseq
      %v1378 = vshrl.u32 %v1377, 7
      %v1379 = vsub.s32 0, %v1378
      %v1380 = vrot.slane %v1355, %v1379
      %v1381 = vlaneseq
      %v1382 = vshrl.u32 %v1381, 7
      %v1383 = vsub.s32 1, %v1382
      %v1384 = vrot.slane %v1355, %v1383
      %v1387 = vmul.f32 %v1380, %v1372
      %v1388 = vmul.f32 %v1384, %v1373
      %v1389 = vmul.f32 %v1380, %v1374
      %v1390 = vmul.f32 %v1384, %v1375
      %v1391 = vadd.f32 %v1343, %v1387
      %v1392 = vadd.f32 %v1344, %v1388
      %v1393 = vadd.f32 %v1345, %v1389
      %v1394 = vadd.f32 %v1346, %v1390
      %v1395 = vld [vmem:[%s381] sm:$0xff]
      %v1396 = vld [vmem:[%s381 + $0x8] sm:$0xff]
      %v1398 = vsel %vm865, %v1395, 0
      %v1401 = vsel %vm865, %v1396, 0
      %1403 = vmatprep.subr.mxu0 %v1298
      %1404 = vmatpush1.msra.mxu0 %v1297
      %1405 = vmatprep.subr.mxu0 %v1300
      %1406 = vmatpush1.msra.mxu0 %v1299
      %1407 = vmatprep.subr.mxu0 0.0
      %1408 = vmatpush1.msra.mxu0 0.0
      %1409 = vmatprep.subr.mxu0 0.0
      %1410 = vmatpush1.msra.mxu0 0.0
      %1411 = vmatprep.subr.mxu0 0.0
      %1412 = vmatpush1.msra.mxu0 0.0
      %1413 = vmatprep.subr.mxu0 0.0
      %1414 = vmatpush1.msra.mxu0 0.0
      %1415 = vmatprep.subr.mxu0 0.0
      %1416 = vmatpush1.msra.mxu0 0.0
      %1417 = vmatprep.subr.mxu0 0.0
      %1418 = vmatpush1.msra.mxu0 0.0
      %1419 = vmatprep.subr.mxu0 0.0
      %1420 = vmatpush1.msra.mxu0 0.0
      %1421 = vmatprep.subr.mxu0 0.0
      %1422 = vmatpush1.msra.mxu0 0.0
      %1423 = vmatprep.subr.mxu0 0.0
      %1424 = vmatpush1.msra.mxu0 0.0
      %1425 = vmatprep.subr.mxu0 0.0
      %1426 = vmatpush1.msra.mxu0 0.0
      %1427 = vmatprep.subr.mxu0 0.0
      %1428 = vmatpush1.msra.mxu0 0.0
      %1429 = vmatprep.subr.mxu0 0.0
      %1430 = vmatpush1.msra.mxu0 0.0
      %1431 = vmatprep.subr.mxu0 0.0
      %1432 = vmatpush1.msra.mxu0 0.0
      %1433 = vmatprep.subr.mxu0 0.0
      %1434 = vmatpush1.msra.mxu0 0.0
      %1435 = vmatprep.subr.mxu0 0.0
      %1436 = vmatpush1.msra.mxu0 0.0
      %1437 = vmatprep.subr.mxu0 0.0
      %1438 = vmatpush1.msra.mxu0 0.0
      %1439 = vmatprep.subr.mxu0 0.0
      %1440 = vmatpush1.msra.mxu0 0.0
      %1441 = vmatprep.subr.mxu0 0.0
      %1442 = vmatpush1.msra.mxu0 0.0
      %1443 = vmatprep.subr.mxu0 0.0
      %1444 = vmatpush1.msra.mxu0 0.0
      %1445 = vmatprep.subr.mxu0 0.0
      %1446 = vmatpush1.msra.mxu0 0.0
      %1447 = vmatprep.subr.mxu0 0.0
      %1448 = vmatpush1.msra.mxu0 0.0
      %1449 = vmatprep.subr.mxu0 0.0
      %1450 = vmatpush1.msra.mxu0 0.0
      %1451 = vmatprep.subr.mxu0 0.0
      %1452 = vmatpush1.msra.mxu0 0.0
      %1453 = vmatprep.subr.mxu0 0.0
      %1454 = vmatpush1.msra.mxu0 0.0
      %1455 = vmatprep.subr.mxu0 0.0
      %1456 = vmatpush1.msra.mxu0 0.0
      %1457 = vmatprep.subr.mxu0 0.0
      %1458 = vmatpush1.msra.mxu0 0.0
      %1459 = vmatprep.subr.mxu0 0.0
      %1460 = vmatpush1.msra.mxu0 0.0
      %1461 = vmatprep.subr.mxu0 0.0
      %1462 = vmatpush1.msra.mxu0 0.0
      %1463 = vmatprep.subr.mxu0 0.0
      %1464 = vmatpush1.msra.mxu0 0.0
      %1465 = vmatprep.subr.mxu0 0.0
      %1466 = vmatpush1.msra.mxu0 0.0
      %1467 = vmatprep.mubr.f32.mxu0 0.0
      %1468 = vmatmul.mubr.f32.gmra.mrb[0].mxu0 %v1398
      %v1469 = vpop.f32.mrb[0].mxu0
      %v1470 = vadd.f32 0.0, %v1469
      %v1471 = vpop.f32.mrb[0].mxu0
      %v1472 = vadd.f32 0.0, %v1471
      %1473 = vmatprep.mubr.f32.mxu0 0.0
      %1474 = vmatmul.mubr.f32.gmra.mrb[0].mxu0 %v1401
      %v1475 = vpop.f32.mrb[0].mxu0
      %v1476 = vadd.f32 0.0, %v1475
      %v1477 = vpop.f32.mrb[0].mxu0
      %v1478 = vadd.f32 0.0, %v1477
      %1479 = vdwg.mxu0
      %v1480 = vmul.f32 %v1391, %v1470
      %v1481 = vmul.f32 %v1392, %v1472
      %v1482 = vmul.f32 %v1393, %v1476
      %v1483 = vmul.f32 %v1394, %v1478
      %v1484 = vadd.f32 %v1480, %v1482
      %v1485 = vrot.slane %v1484, 4
      %v1486 = vadd.f32 %v1484, %v1485
      %v1487 = vrot.slane %v1486, 2
      %v1488 = vadd.f32 %v1486, %v1487
      %v1489 = vrot.slane %v1488, 1
      %v1490 = vadd.f32 %v1488, %v1489
      %v1491 = vadd.f32 %v1481, %v1483
      %v1492 = vrot.slane %v1491, 4
      %v1493 = vadd.f32 %v1491, %v1492
      %v1494 = vrot.slane %v1493, 2
      %v1495 = vadd.f32 %v1493, %v1494
      %v1496 = vrot.slane %v1495, 1
      %v1497 = vadd.f32 %v1495, %v1496
      %v1500 = vcombine.low %v1490, %v1497
      %v1502 = vunpack.c.l.s4 1966171168
      %v1503 = vunpack.c.0.s8 %v1502
      %v1504 = vlaneseq
      %v1505 = vshrl.u32 %v1504, 7
      %v1506 = vsub.s32 %v1503, %v1505
      %v1507 = vrot.slane %v1500, %v1506
      %v1509 = vunpack.c.l.s4 1966171168
      %v1510 = vunpack.c.0.s8 %v1509
      %v1511 = vlaneseq
      %v1512 = vshrl.u32 %v1511, 7
      %v1513 = vsub.s32 %v1510, %v1512
      %v1514 = vrot.slane %v1507, %v1513
      %v1516 = vlaneseq
      %vm1517 = vcmp.ge.s32.totalorder %v1516, 0
      %vm1518 = vcmp.lt.s32.totalorder %v1516, 256
      %vm1519 = vmand %vm1517, %vm1518
      %1520 = vst.msk [vmem:[%s385] sm:$0x3] %vm1519, %v1514
      %1521 = vst [vmem:[%s390] sm:$0xff] %v1167
      %1522 = vst [vmem:[%s390 + $0x8] sm:$0xff] %v1169
      %p1523 = scmp.lt.s32.totalorder %s22, 1
      %s1524 = scalar_select %p1523, %s22, 1
      %s1525 = smul.addr %s1524, 2
      %s1526 = scalar_lea.vmem %s9, %s1525
      %p1527 = scmp.lt.s32.totalorder %s22, 1
      %s1528 = scalar_select %p1527, %s22, 1
      %s1529 = smul.addr %s1528, 2
      %s1530 = smul.addr %s1529, 8
      %s1531 = scalar_lea.vmem %s10, %s1530
      // Predicated region
      $region57: #{voxel_model_forward.1} parent=55 // pred_check
        %p1532 = pneg %p239
      $region58: #{voxel_model_forward.1} parent=55 // pred_check_branch
        %1534 = sbr.rel (%p1532) target = $region60
      $region59: #{voxel_model_forward.1} parent=55 // pred_region
        _
      $region60: #{voxel_model_forward.1} parent=55 // pred_fallthru
        _
      // Predicated region
      $region61: #{voxel_model_forward.1} parent=55 // pred_check
        %p1535 = pneg %p265
      $region62: #{voxel_model_forward.1} parent=55 // pred_check_branch
        %1537 = sbr.rel (%p1535) target = $region64
      $region63: #{voxel_model_forward.1} parent=55 // pred_region
        _
      $region64: #{voxel_model_forward.1} parent=55 // pred_fallthru
        _
    $region56: #{voxel_model_forward.1} parent=5 // pred_fallthru
      _
    %p1538 = scmp.le.s32.totalorder 2, %s17
    // Predicated region
    $region65: #{voxel_model_forward.1} parent=5 // pred_check
      %p1539 = pneg %p1538
    $region66: #{voxel_model_forward.1} parent=5 // pred_check_branch
      %1541 = sbr.rel (%p1539) target = $region68
    $region67: #{voxel_model_forward.1} parent=5 // pred_region
      %s1542 = ssub.s32 %s17, 2
      // Predicated region
      $region69: #{voxel_model_forward.1} parent=67 // pred_check
        %p1543 = pneg %p245
      $region70: #{voxel_model_forward.1} parent=67 // pred_check_branch
        %1545 = sbr.rel (%p1543) target = $region72
      $region71: #{voxel_model_forward.1} parent=67 // pred_region
        %p1546 = scmp.lt.s32.totalorder %s23, 1
        %s1547 = scalar_select %p1546, %s23, 1
        %s1548 = smul.addr %s1547, 2
        %s1549 = scalar_lea.vmem %s9, %s1548
      $region72: #{voxel_model_forward.1} parent=67 // pred_fallthru
        _
      // Predicated region
      $region73: #{voxel_model_forward.1} parent=67 // pred_check
        %p1550 = pneg %p271
      $region74: #{voxel_model_forward.1} parent=67 // pred_check_branch
        %1552 = sbr.rel (%p1550) target = $region76
      $region75: #{voxel_model_forward.1} parent=67 // pred_region
        %p1553 = scmp.lt.s32.totalorder %s23, 1
        %s1554 = scalar_select %p1553, %s23, 1
        %s1555 = smul.addr %s1554, 2
        %s1556 = smul.addr %s1555, 8
        %s1557 = scalar_lea.vmem %s10, %s1556
      $region76: #{voxel_model_forward.1} parent=67 // pred_fallthru
        _
    $region68: #{voxel_model_forward.1} parent=5 // pred_fallthru
      _
  $region6: #{voxel_model_forward.1} parent=0 // loop_footer
    %s21 = sadd.s32 1, %s17
  $region7: #{voxel_model_forward.1} parent=0 // loop_footer_branch
    %16 = sbr.rel target = $region3
  $region8: #{voxel_model_forward.1} parent=0 // loop_exit
    _

</llo_original>
